<compile_context>
chip_gen: v7x
topology: tpu7x:2x2x1
jax: 0.10.0
libtpu: 0.0.40
codegen_flags: <defaults>
</compile_context>

<pallas_src>
import functools

import jax
import jax.numpy as jnp
from jax.experimental import pallas as pl
from jax.experimental.pallas import tpu as pltpu

_LANE = 128
_ALIGN = 256                      # pad flattened spatial dim to this multiple
_COMPUTE_DTYPE = jnp.bfloat16     # streamed activations / matmul weights
_VMEM_LIMIT = 32 * 1024 * 1024    # explicit scoped-VMEM budget (fits all gens)


# ----------------------------- helpers --------------------------------------

def _round_up(x, m):
    return ((x + m - 1) // m) * m


def _apply_act(y, act):
    if act is None:
        return y
    if act == 'relu':
        return jnp.maximum(y, 0.0)
    if act == 'gelu':
        return jax.nn.gelu(y)
    raise ValueError(f"unknown activation {act}")


def _lane_tile(M, target=2048):
    """Largest multiple of 128 that divides M, <= target, and (when possible)
    yields at least 2 grid steps so both v7x TensorCores have work."""
    assert M % _LANE == 0, "flattened spatial dim must be lane-aligned"
    cap = min(target, M if M < 2 * _LANE else M // 2)
    best = _LANE
    t = 2 * _LANE
    while t <= cap:
        if M % t == 0:
            best = t
        t += _LANE
    return best


def _compiler_params():
    return pltpu.CompilerParams(dimension_semantics=("parallel",),
                                vmem_limit_bytes=_VMEM_LIMIT)


# ----------------------------- Pallas kernels -------------------------------

def _linear_cm_kernel(*refs, act, has_add):
    """o[N,tm] = act(wT[N,K] @ x[K,tm] + b[N,1] (+ add[N,tm])), f32 epilogue."""
    if has_add:
        x_ref, w_ref, b_ref, a_ref, o_ref = refs
    else:
        x_ref, w_ref, b_ref, o_ref = refs
    y = jnp.dot(w_ref[...], x_ref[...], preferred_element_type=jnp.float32)
    y = y + b_ref[...]
    if has_add:
        y = y + a_ref[...].astype(jnp.float32)
    o_ref[...] = _apply_act(y, act)


def pallas_linear_cm(x, wT, b, add=None, act=None, tm_target=2048):
    """Channel-major linear: act(wT @ x + b [+ add]).
    x:[K,M] wT:[N,K] b:[N] add:[N,M] -> [N,M] f32 (M lane-aligned)."""
    K, M = x.shape
    N = wT.shape[0]
    tm = _lane_tile(M, tm_target)
    x = x.astype(_COMPUTE_DTYPE)
    wT = wT.astype(_COMPUTE_DTYPE)
    args = [x, wT, b.reshape(N, 1).astype(jnp.float32)]
    in_specs = [
        pl.BlockSpec((K, tm), lambda i: (0, i)),
        pl.BlockSpec((N, K), lambda i: (0, 0)),
        pl.BlockSpec((N, 1), lambda i: (0, 0)),
    ]
    if add is not None:
        args.append(add.astype(_COMPUTE_DTYPE))
        in_specs.append(pl.BlockSpec((N, tm), lambda i: (0, i)))
    return pl.pallas_call(
        functools.partial(_linear_cm_kernel, act=act, has_add=add is not None),
        out_shape=jax.ShapeDtypeStruct((N, M), jnp.float32),
        grid=(pl.cdiv(M, tm),),
        in_specs=in_specs,
        out_specs=pl.BlockSpec((N, tm), lambda i: (0, i)),
        compiler_params=_compiler_params(),
    )(*args)


def _mlp2_kernel(x_ref, w0_ref, b0_ref, w1_ref, b1_ref, o_ref, *, act0, act1):
    """Fused 2-layer MLP; intermediate [N0, tm] stays on-chip."""
    h = jnp.dot(w0_ref[...], x_ref[...], preferred_element_type=jnp.float32)
    h = _apply_act(h + b0_ref[...], act0)
    y = jnp.dot(w1_ref[...], h.astype(w1_ref.dtype),
                preferred_element_type=jnp.float32)
    o_ref[...] = _apply_act(y + b1_ref[...], act1)


def pallas_mlp2(x, w0, b0, w1, b1, act0='relu', act1=None, tm_target=2048):
    """x:[K,M] w0:[N0,K] w1:[N1,N0] -> [N1,M] f32 (channel-major, fused)."""
    K, M = x.shape
    N0, N1 = w0.shape[0], w1.shape[0]
    tm = _lane_tile(M, tm_target)
    return pl.pallas_call(
        functools.partial(_mlp2_kernel, act0=act0, act1=act1),
        out_shape=jax.ShapeDtypeStruct((N1, M), jnp.float32),
        grid=(pl.cdiv(M, tm),),
        in_specs=[pl.BlockSpec((K, tm), lambda i: (0, i)),
                  pl.BlockSpec((N0, K), lambda i: (0, 0)),
                  pl.BlockSpec((N0, 1), lambda i: (0, 0)),
                  pl.BlockSpec((N1, N0), lambda i: (0, 0)),
                  pl.BlockSpec((N1, 1), lambda i: (0, 0))],
        out_specs=pl.BlockSpec((N1, tm), lambda i: (0, i)),
        compiler_params=_compiler_params(),
    )(x.astype(_COMPUTE_DTYPE),
      w0.astype(_COMPUTE_DTYPE), b0.reshape(N0, 1).astype(jnp.float32),
      w1.astype(_COMPUTE_DTYPE), b1.reshape(N1, 1).astype(jnp.float32))


def _proj_epilogue_kernel(x_ref, w0_ref, b0_ref, w1_ref, b1_ref, f_ref, o_ref):
    """Projection MLP (relu, linear->2) fused with field*(1+pred) epilogue."""
    h = jnp.dot(w0_ref[...], x_ref[...], preferred_element_type=jnp.float32)
    h = jnp.maximum(h + b0_ref[...], 0.0)
    pred = jnp.dot(w1_ref[...], h.astype(w1_ref.dtype),
                   preferred_element_type=jnp.float32)
    pred = pred + b1_ref[...]                       # [2, tm]  (f32)
    p_r, p_i = pred[0:1, :], pred[1:2, :]
    f_r, f_i = f_ref[0:1, :], f_ref[1:2, :]
    o_ref[0:1, :] = f_r * (1.0 + p_r) - f_i * p_i
    o_ref[1:2, :] = f_r * p_i + f_i * (1.0 + p_r)


def pallas_proj_epilogue(x, w0, b0, w1, b1, field, tm_target=2048):
    """x:[L,M] field:[2,M] -> [2,M] (real, imag), written exactly once."""
    K, M = x.shape
    N0, N1 = w0.shape[0], w1.shape[0]
    tm = _lane_tile(M, tm_target)
    return pl.pallas_call(
        _proj_epilogue_kernel,
        out_shape=jax.ShapeDtypeStruct((N1, M), jnp.float32),
        grid=(pl.cdiv(M, tm),),
        in_specs=[pl.BlockSpec((K, tm), lambda i: (0, i)),
                  pl.BlockSpec((N0, K), lambda i: (0, 0)),
                  pl.BlockSpec((N0, 1), lambda i: (0, 0)),
                  pl.BlockSpec((N1, N0), lambda i: (0, 0)),
                  pl.BlockSpec((N1, 1), lambda i: (0, 0)),
                  pl.BlockSpec((2, tm), lambda i: (0, i))],
        out_specs=pl.BlockSpec((N1, tm), lambda i: (0, i)),
        compiler_params=_compiler_params(),
    )(x.astype(_COMPUTE_DTYPE),
      w0.astype(_COMPUTE_DTYPE), b0.reshape(N0, 1).astype(jnp.float32),
      w1.astype(_COMPUTE_DTYPE), b1.reshape(N1, 1).astype(jnp.float32),
      field.astype(jnp.float32))


# ----------------------------- spectral path --------------------------------

def fourier_conv2d(x, w1, w2, wn1, wn2):
    """FourierConv2D.forward, channel-major.  x:[Ci,B,Hp,Wp] -> [Co,B,Hp,Wp].
    Real and imaginary parts are mixed independently (the trailing '2' of the
    reference einsum is a batch axis), matching the PyTorch source.
    The whole spectral slab is a few KB, so the mode-mix einsum is left to XLA
    (a lane-sparse Pallas kernel here was strictly slower)."""
    Ci, B, Hp, Wp = x.shape
    Co = w1.shape[1]
    Wfp = Wp // 2 + 1
    assert 2 * wn1 <= Hp and wn2 <= Wfp, "wavenumber too large for grid"
    # TODO(synk): FFT has no Pallas equivalent; computed with jnp.fft.
    x_ft = jnp.fft.rfft2(x, axes=(-2, -1))            # [Ci,B,Hp,Wfp] complex64

    def mix(blk, w):                                  # blk:[Ci,B,wn1,wn2]
        re = jnp.einsum('ibxy,ioxy->obxy', blk.real, w[..., 0])
        im = jnp.einsum('ibxy,ioxy->obxy', blk.imag, w[..., 1])
        return jax.lax.complex(re, im)                # [Co,B,wn1,wn2]

    o_lo = mix(x_ft[:, :, :wn1, :wn2], w1)
    o_hi = mix(x_ft[:, :, Hp - wn1:, :wn2], w2)
    zcol = jnp.zeros((Co, B, wn1, Wfp - wn2), jnp.complex64)
    top = jnp.concatenate([o_lo, zcol], axis=-1)      # [Co,B,wn1,Wfp]
    bot = jnp.concatenate([o_hi, zcol], axis=-1)
    mid = jnp.zeros((Co, B, Hp - 2 * wn1, Wfp), jnp.complex64)
    out_ft = jnp.concatenate([top, mid, bot], axis=2)  # [Co,B,Hp,Wfp]
    return jnp.fft.irfft2(out_ft, s=(Hp, Wp), axes=(-2, -1))


# ----------------------------- forward pass ----------------------------------

def fno_forward(params, cfg, input_data, src_data):
    """input_data:[B,H,W,1]  src_data:[B,H,W,3] -> [B,H,W,2]."""
    B, H, W, _ = input_data.shape
    M0 = B * H * W
    M0p = _round_up(M0, _ALIGN)

    # get_grid2D + channel concat, built directly in channel-major layout.
    gx = jnp.broadcast_to(
        jnp.linspace(0.0, 1.0, H, dtype=jnp.float32).reshape(1, 1, H, 1),
        (1, B, H, W))
    gy = jnp.broadcast_to(
        jnp.linspace(0.0, 1.0, W, dtype=jnp.float32).reshape(1, 1, 1, W),
        (1, B, H, W))
    inp_c = jnp.transpose(input_data, (3, 0, 1, 2))            # [1,B,H,W]
    src_c = jnp.transpose(src_data, (3, 0, 1, 2))              # [3,B,H,W]
    _input = jnp.concatenate([inp_c, gx, gy, src_c], axis=0).reshape(-1, M0)
    field = src_c[1:3].reshape(2, M0)                          # (real, imag)

    # Pad the flattened spatial dim ONCE to lane alignment; cropped at the end.
    _input = jnp.pad(_input, ((0, 0), (0, M0p - M0)))
    field_p = jnp.pad(field, ((0, 0), (0, M0p - M0)))

    # Lifting MLP (Linear+relu, Linear) -- one fused, lane-dense kernel.
    h = pallas_mlp2(_input,
                    params['lift_w0'], params['lift_b0'],
                    params['lift_w1'], params['lift_b1'],
                    act0='relu', act1=None)                    # [L, M0p] f32
    L = h.shape[0]

    # pad bottom/right of H, W (matches F.pad([0,p,0,p]) on NCHW).
    p = cfg['padding']
    Hp, Wp = H + p, W + p
    Mp = B * Hp * Wp
    Mpp = _round_up(Mp, _ALIGN)
    h4 = jnp.pad(h[:, :M0].reshape(L, B, H, W),
                 ((0, 0), (0, 0), (0, p), (0, p)))
    # [L, Mpp] flat is the canonical activation layout between layers.
    h_flat = jnp.pad(h4.reshape(L, Mp), ((0, 0), (0, Mpp - Mp)))

    n_layers = len(cfg['wavenumber'])
    for l in range(n_layers):
        act = None if l == n_layers - 1 else cfg['activation']
        wn = cfg['wavenumber'][l]
        prm = params['fourier'][l]
        # Spectral branch needs the true spatial layout; slice off lane pad.
        x_sp = h_flat[:, :Mp].reshape(L, B, Hp, Wp)
        x1 = fourier_conv2d(x_sp, prm['w1'], prm['w2'], wn, wn)  # [L,B,Hp,Wp]
        x1_flat = jnp.pad(x1.reshape(L, Mp), ((0, 0), (0, Mpp - Mp)))
        # 1x1 conv + residual add + activation fused, lane-dense, 128-aligned.
        h_flat = pallas_linear_cm(h_flat, prm['Ww'], prm['Wb'],
                                  add=x1_flat, act=act)          # [L, Mpp]

    # Crop the spatial padding, re-align lanes for the projection kernel.
    h_crop = h_flat[:, :Mp].reshape(L, B, Hp, Wp)[:, :, :H, :W].reshape(L, M0)
    h_crop = jnp.pad(h_crop, ((0, 0), (0, M0p - M0)))

    # Projection MLP + complex epilogue field*(1+pred), one fused kernel.
    out_p = pallas_proj_epilogue(h_crop,
                                 params['proj_w0'], params['proj_b0'],
                                 params['proj_w1'], params['proj_b1'],
                                 field_p)                        # [2, M0p]
    out = out_p[:, :M0]
    return jnp.transpose(out.reshape(2, B, H, W), (1, 2, 3, 0))


# ----------------------------- params init -----------------------------------

def init_params(key, cfg):
    L = cfg['lifting_size']
    D = cfg['input_dim']
    keys = list(jax.random.split(key, 8 + 4 * len(cfg['wavenumber'])))
    ki = iter(keys)

    def lin(k, fin, fout):
        """nn.Linear / 1x1 nn.Conv2d init; weight stored as [out, in]."""
        bound = 1.0 / float(fin) ** 0.5
        kw, kb = jax.random.split(k)
        w = jax.random.uniform(kw, (fout, fin), jnp.float32, -bound, bound)
        b = jax.random.uniform(kb, (fout,), jnp.float32, -bound, bound)
        return w, b

    params = {}
    params['lift_w0'], params['lift_b0'] = lin(next(ki), D, L // 2)
    params['lift_w1'], params['lift_b1'] = lin(next(ki), L // 2, L)
    params['fourier'] = []
    scale = 1.0 / (L * L)
    for wn in cfg['wavenumber']:
        w1 = scale * jax.random.uniform(next(ki), (L, L, wn, wn, 2), jnp.float32)
        w2 = scale * jax.random.uniform(next(ki), (L, L, wn, wn, 2), jnp.float32)
        Ww, Wb = lin(next(ki), L, L)       # 1x1 conv as [Cout, Cin] matrix
        params['fourier'].append(dict(w1=w1, w2=w2, Ww=Ww, Wb=Wb))
    params['proj_w0'], params['proj_b0'] = lin(next(ki), L, L // 2)
    params['proj_w1'], params['proj_b1'] = lin(next(ki), L // 2, 2)
    return params


# --------------------------------- main ---------------------------------------

if __name__ == "__main__":
    cfg = dict(input_dim=6, lifting_size=16, lifting='None', proj='None',
               wavenumber=[4, 4], activation='relu', padding=4)
    key = jax.random.PRNGKey(0)
    k1, k2, k3 = jax.random.split(key, 3)
    B, H, W = 2, 16, 16
    input_data = jax.random.normal(k1, (B, H, W, 1), jnp.float32)
    # NOTE: src_data has 3 channels so that field = src_data[..., 1:] has the
    # 2 (real, imag) channels required by view_as_complex in the reference
    # (the reference docstring's [B,H,W,2] would make that call invalid).
    src_data = jax.random.normal(k2, (B, H, W, 3), jnp.float32)

    params = init_params(k3, cfg)
    fwd = jax.jit(lambda prm, a, b: fno_forward(prm, cfg, a, b))
    out = fwd(params, input_data, src_data)
    jax.block_until_ready(out)
    assert out.shape == (B, H, W, 2) and out.dtype == jnp.float32
    print("KERNEL_OK")
</pallas_src>

<mosaic_0001>
module attributes {stable_mosaic.version = 11 : i64} {
  func.func @_mlp2_kernel(%arg0: i32, %arg1: memref<6x256xbf16, #tpu.memory_space<vmem>>, %arg2: memref<8x6xbf16, #tpu.memory_space<vmem>>, %arg3: memref<8x1xf32, #tpu.memory_space<vmem>>, %arg4: memref<16x8xbf16, #tpu.memory_space<vmem>>, %arg5: memref<16x1xf32, #tpu.memory_space<vmem>>, %arg6: memref<16x256xf32, #tpu.memory_space<vmem>>) attributes {dimension_semantics = [#tpu.dimension_semantics<parallel>], iteration_bounds = array<i64: 2>, scalar_prefetch = 0 : i64, scratch_operands = 0 : i64, tpu.core_type = #tpu.core_type<tc>, window_params = [{transform_indices = @transform_0, window_bounds = array<i64: 6, 256>}, {pipeline_mode = #tpu.pipeline_mode<synchronous>, transform_indices = @transform_1, window_bounds = array<i64: 8, 6>}, {pipeline_mode = #tpu.pipeline_mode<synchronous>, transform_indices = @transform_2, window_bounds = array<i64: 8, 1>}, {pipeline_mode = #tpu.pipeline_mode<synchronous>, transform_indices = @transform_3, window_bounds = array<i64: 16, 8>}, {pipeline_mode = #tpu.pipeline_mode<synchronous>, transform_indices = @transform_4, window_bounds = array<i64: 16, 1>}, {transform_indices = @transform_5, window_bounds = array<i64: 16, 256>}]} {
    %c0 = arith.constant 0 : index
    %c0_0 = arith.constant 0 : index
    %0 = vector.load %arg2[%c0, %c0_0] : memref<8x6xbf16, #tpu.memory_space<vmem>>, vector<8x6xbf16>
    %c0_1 = arith.constant 0 : index
    %c0_2 = arith.constant 0 : index
    %1 = vector.load %arg1[%c0_1, %c0_2] : memref<6x256xbf16, #tpu.memory_space<vmem>>, vector<6x256xbf16>
    %cst = arith.constant dense<0.000000e+00> : vector<8x256xf32>
    %2 = tpu.matmul %0, %1, %cst {dimension_numbers = #tpu.dot_dimension_numbers<[1], [0], [0], [1], [0, 0, 1, 1], [], []>} : vector<8x6xbf16>, vector<6x256xbf16>, vector<8x256xf32> -> vector<8x256xf32>
    %c0_3 = arith.constant 0 : index
    %c0_4 = arith.constant 0 : index
    %3 = vector.load %arg3[%c0_3, %c0_4] : memref<8x1xf32, #tpu.memory_space<vmem>>, vector<8x1xf32>
    %4 = vector.broadcast %3 : vector<8x1xf32> to vector<8x256xf32>
    %5 = arith.addf %2, %4 : vector<8x256xf32>
    %cst_5 = arith.constant 0.000000e+00 : f32
    %6 = vector.broadcast %cst_5 : f32 to vector<8x256xf32>
    %7 = arith.maximumf %5, %6 : vector<8x256xf32>
    %c0_6 = arith.constant 0 : index
    %c0_7 = arith.constant 0 : index
    %8 = vector.load %arg4[%c0_6, %c0_7] : memref<16x8xbf16, #tpu.memory_space<vmem>>, vector<16x8xbf16>
    %9 = arith.truncf %7 : vector<8x256xf32> to vector<8x256xbf16>
    %cst_8 = arith.constant dense<0.000000e+00> : vector<16x256xf32>
    %10 = tpu.matmul %8, %9, %cst_8 {dimension_numbers = #tpu.dot_dimension_numbers<[1], [0], [0], [1], [0, 0, 1, 1], [], []>} : vector<16x8xbf16>, vector<8x256xbf16>, vector<16x256xf32> -> vector<16x256xf32>
    %c0_9 = arith.constant 0 : index
    %c0_10 = arith.constant 0 : index
    %11 = vector.load %arg5[%c0_9, %c0_10] : memref<16x1xf32, #tpu.memory_space<vmem>>, vector<16x1xf32>
    %12 = vector.broadcast %11 : vector<16x1xf32> to vector<16x256xf32>
    %13 = arith.addf %10, %12 : vector<16x256xf32>
    %c0_11 = arith.constant 0 : index
    %c0_12 = arith.constant 0 : index
    %14 = vector.load %arg6[%c0_11, %c0_12] : memref<16x256xf32, #tpu.memory_space<vmem>>, vector<16x256xf32>
    tpu.vector_store %arg6[%c0_11, %c0_12], %13 {strides = array<i32>} : memref<16x256xf32, #tpu.memory_space<vmem>>, vector<16x256xf32>,
    return
  }
  func.func @transform_0(%arg0: i32) -> (i32, i32) {
    %c0_i32 = arith.constant 0 : i32
    %c0_i32_0 = arith.constant 0 : i32
    return %c0_i32, %arg0 : i32, i32
  }
  func.func @transform_1(%arg0: i32) -> (i32, i32) {
    %c0_i32 = arith.constant 0 : i32
    %c0_i32_0 = arith.constant 0 : i32
    %c0_i32_1 = arith.constant 0 : i32
    return %c0_i32, %c0_i32_0 : i32, i32
  }
  func.func @transform_2(%arg0: i32) -> (i32, i32) {
    %c0_i32 = arith.constant 0 : i32
    %c0_i32_0 = arith.constant 0 : i32
    %c0_i32_1 = arith.constant 0 : i32
    return %c0_i32, %c0_i32_0 : i32, i32
  }
  func.func @transform_3(%arg0: i32) -> (i32, i32) {
    %c0_i32 = arith.constant 0 : i32
    %c0_i32_0 = arith.constant 0 : i32
    %c0_i32_1 = arith.constant 0 : i32
    return %c0_i32, %c0_i32_0 : i32, i32
  }
  func.func @transform_4(%arg0: i32) -> (i32, i32) {
    %c0_i32 = arith.constant 0 : i32
    %c0_i32_0 = arith.constant 0 : i32
    %c0_i32_1 = arith.constant 0 : i32
    return %c0_i32, %c0_i32_0 : i32, i32
  }
  func.func @transform_5(%arg0: i32) -> (i32, i32) {
    %c0_i32 = arith.constant 0 : i32
    %c0_i32_0 = arith.constant 0 : i32
    return %c0_i32, %arg0 : i32, i32
  }
}

module attributes {stable_mosaic.version = 11 : i64} {
  func.func @_linear_cm_kernel(%arg0: i32, %arg1: memref<16x512xbf16, #tpu.memory_space<vmem>>, %arg2: memref<16x16xbf16, #tpu.memory_space<vmem>>, %arg3: memref<16x1xf32, #tpu.memory_space<vmem>>, %arg4: memref<16x512xbf16, #tpu.memory_space<vmem>>, %arg5: memref<16x512xf32, #tpu.memory_space<vmem>>) attributes {dimension_semantics = [#tpu.dimension_semantics<parallel>], iteration_bounds = array<i64: 2>, scalar_prefetch = 0 : i64, scratch_operands = 0 : i64, tpu.core_type = #tpu.core_type<tc>, window_params = [{transform_indices = @transform_0, window_bounds = array<i64: 16, 512>}, {pipeline_mode = #tpu.pipeline_mode<synchronous>, transform_indices = @transform_1, window_bounds = array<i64: 16, 16>}, {pipeline_mode = #tpu.pipeline_mode<synchronous>, transform_indices = @transform_2, window_bounds = array<i64: 16, 1>}, {transform_indices = @transform_3, window_bounds = array<i64: 16, 512>}, {transform_indices = @transform_4, window_bounds = array<i64: 16, 512>}]} {
    %c0 = arith.constant 0 : index
    %c0_0 = arith.constant 0 : index
    %0 = vector.load %arg2[%c0, %c0_0] : memref<16x16xbf16, #tpu.memory_space<vmem>>, vector<16x16xbf16>
    %c0_1 = arith.constant 0 : index
    %c0_2 = arith.constant 0 : index
    %1 = vector.load %arg1[%c0_1, %c0_2] : memref<16x512xbf16, #tpu.memory_space<vmem>>, vector<16x512xbf16>
    %cst = arith.constant dense<0.000000e+00> : vector<16x512xf32>
    %2 = tpu.matmul %0, %1, %cst {dimension_numbers = #tpu.dot_dimension_numbers<[1], [0], [0], [1], [0, 0, 1, 1], [], []>} : vector<16x16xbf16>, vector<16x512xbf16>, vector<16x512xf32> -> vector<16x512xf32>
    %c0_3 = arith.constant 0 : index
    %c0_4 = arith.constant 0 : index
    %3 = vector.load %arg3[%c0_3, %c0_4] : memref<16x1xf32, #tpu.memory_space<vmem>>, vector<16x1xf32>
    %4 = vector.broadcast %3 : vector<16x1xf32> to vector<16x512xf32>
    %5 = arith.addf %2, %4 : vector<16x512xf32>
    %c0_5 = arith.constant 0 : index
    %c0_6 = arith.constant 0 : index
    %6 = vector.load %arg4[%c0_5, %c0_6] : memref<16x512xbf16, #tpu.memory_space<vmem>>, vector<16x512xbf16>
    %7 = arith.extf %6 : vector<16x512xbf16> to vector<16x512xf32>
    %8 = arith.addf %5, %7 : vector<16x512xf32>
    %cst_7 = arith.constant 0.000000e+00 : f32
    %9 = vector.broadcast %cst_7 : f32 to vector<16x512xf32>
    %10 = arith.maximumf %8, %9 : vector<16x512xf32>
    %c0_8 = arith.constant 0 : index
    %c0_9 = arith.constant 0 : index
    %11 = vector.load %arg5[%c0_8, %c0_9] : memref<16x512xf32, #tpu.memory_space<vmem>>, vector<16x512xf32>
    tpu.vector_store %arg5[%c0_8, %c0_9], %10 {strides = array<i32>} : memref<16x512xf32, #tpu.memory_space<vmem>>, vector<16x512xf32>,
    return
  }
  func.func @transform_0(%arg0: i32) -> (i32, i32) {
    %c0_i32 = arith.constant 0 : i32
    %c0_i32_0 = arith.constant 0 : i32
    return %c0_i32, %arg0 : i32, i32
  }
  func.func @transform_1(%arg0: i32) -> (i32, i32) {
    %c0_i32 = arith.constant 0 : i32
    %c0_i32_0 = arith.constant 0 : i32
    %c0_i32_1 = arith.constant 0 : i32
    return %c0_i32, %c0_i32_0 : i32, i32
  }
  func.func @transform_2(%arg0: i32) -> (i32, i32) {
    %c0_i32 = arith.constant 0 : i32
    %c0_i32_0 = arith.constant 0 : i32
    %c0_i32_1 = arith.constant 0 : i32
    return %c0_i32, %c0_i32_0 : i32, i32
  }
  func.func @transform_3(%arg0: i32) -> (i32, i32) {
    %c0_i32 = arith.constant 0 : i32
    %c0_i32_0 = arith.constant 0 : i32
    return %c0_i32, %arg0 : i32, i32
  }
  func.func @transform_4(%arg0: i32) -> (i32, i32) {
    %c0_i32 = arith.constant 0 : i32
    %c0_i32_0 = arith.constant 0 : i32
    return %c0_i32, %arg0 : i32, i32
  }
}

module attributes {stable_mosaic.version = 11 : i64} {
  func.func @_linear_cm_kernel(%arg0: i32, %arg1: memref<16x512xbf16, #tpu.memory_space<vmem>>, %arg2: memref<16x16xbf16, #tpu.memory_space<vmem>>, %arg3: memref<16x1xf32, #tpu.memory_space<vmem>>, %arg4: memref<16x512xbf16, #tpu.memory_space<vmem>>, %arg5: memref<16x512xf32, #tpu.memory_space<vmem>>) attributes {dimension_semantics = [#tpu.dimension_semantics<parallel>], iteration_bounds = array<i64: 2>, scalar_prefetch = 0 : i64, scratch_operands = 0 : i64, tpu.core_type = #tpu.core_type<tc>, window_params = [{transform_indices = @transform_0, window_bounds = array<i64: 16, 512>}, {pipeline_mode = #tpu.pipeline_mode<synchronous>, transform_indices = @transform_1, window_bounds = array<i64: 16, 16>}, {pipeline_mode = #tpu.pipeline_mode<synchronous>, transform_indices = @transform_2, window_bounds = array<i64: 16, 1>}, {transform_indices = @transform_3, window_bounds = array<i64: 16, 512>}, {transform_indices = @transform_4, window_bounds = array<i64: 16, 512>}]} {
    %c0 = arith.constant 0 : index
    %c0_0 = arith.constant 0 : index
    %0 = vector.load %arg2[%c0, %c0_0] : memref<16x16xbf16, #tpu.memory_space<vmem>>, vector<16x16xbf16>
    %c0_1 = arith.constant 0 : index
    %c0_2 = arith.constant 0 : index
    %1 = vector.load %arg1[%c0_1, %c0_2] : memref<16x512xbf16, #tpu.memory_space<vmem>>, vector<16x512xbf16>
    %cst = arith.constant dense<0.000000e+00> : vector<16x512xf32>
    %2 = tpu.matmul %0, %1, %cst {dimension_numbers = #tpu.dot_dimension_numbers<[1], [0], [0], [1], [0, 0, 1, 1], [], []>} : vector<16x16xbf16>, vector<16x512xbf16>, vector<16x512xf32> -> vector<16x512xf32>
    %c0_3 = arith.constant 0 : index
    %c0_4 = arith.constant 0 : index
    %3 = vector.load %arg3[%c0_3, %c0_4] : memref<16x1xf32, #tpu.memory_space<vmem>>, vector<16x1xf32>
    %4 = vector.broadcast %3 : vector<16x1xf32> to vector<16x512xf32>
    %5 = arith.addf %2, %4 : vector<16x512xf32>
    %c0_5 = arith.constant 0 : index
    %c0_6 = arith.constant 0 : index
    %6 = vector.load %arg4[%c0_5, %c0_6] : memref<16x512xbf16, #tpu.memory_space<vmem>>, vector<16x512xbf16>
    %7 = arith.extf %6 : vector<16x512xbf16> to vector<16x512xf32>
    %8 = arith.addf %5, %7 : vector<16x512xf32>
    %c0_7 = arith.constant 0 : index
    %c0_8 = arith.constant 0 : index
    %9 = vector.load %arg5[%c0_7, %c0_8] : memref<16x512xf32, #tpu.memory_space<vmem>>, vector<16x512xf32>
    tpu.vector_store %arg5[%c0_7, %c0_8], %8 {strides = array<i32>} : memref<16x512xf32, #tpu.memory_space<vmem>>, vector<16x512xf32>,
    return
  }
  func.func @transform_0(%arg0: i32) -> (i32, i32) {
    %c0_i32 = arith.constant 0 : i32
    %c0_i32_0 = arith.constant 0 : i32
    return %c0_i32, %arg0 : i32, i32
  }
  func.func @transform_1(%arg0: i32) -> (i32, i32) {
    %c0_i32 = arith.constant 0 : i32
    %c0_i32_0 = arith.constant 0 : i32
    %c0_i32_1 = arith.constant 0 : i32
    return %c0_i32, %c0_i32_0 : i32, i32
  }
  func.func @transform_2(%arg0: i32) -> (i32, i32) {
    %c0_i32 = arith.constant 0 : i32
    %c0_i32_0 = arith.constant 0 : i32
    %c0_i32_1 = arith.constant 0 : i32
    return %c0_i32, %c0_i32_0 : i32, i32
  }
  func.func @transform_3(%arg0: i32) -> (i32, i32) {
    %c0_i32 = arith.constant 0 : i32
    %c0_i32_0 = arith.constant 0 : i32
    return %c0_i32, %arg0 : i32, i32
  }
  func.func @transform_4(%arg0: i32) -> (i32, i32) {
    %c0_i32 = arith.constant 0 : i32
    %c0_i32_0 = arith.constant 0 : i32
    return %c0_i32, %arg0 : i32, i32
  }
}

module attributes {stable_mosaic.version = 11 : i64} {
  func.func @_proj_epilogue_kernel(%arg0: i32, %arg1: memref<16x256xbf16, #tpu.memory_space<vmem>>, %arg2: memref<8x16xbf16, #tpu.memory_space<vmem>>, %arg3: memref<8x1xf32, #tpu.memory_space<vmem>>, %arg4: memref<2x8xbf16, #tpu.memory_space<vmem>>, %arg5: memref<2x1xf32, #tpu.memory_space<vmem>>, %arg6: memref<2x256xf32, #tpu.memory_space<vmem>>, %arg7: memref<2x256xf32, #tpu.memory_space<vmem>>) attributes {dimension_semantics = [#tpu.dimension_semantics<parallel>], iteration_bounds = array<i64: 2>, scalar_prefetch = 0 : i64, scratch_operands = 0 : i64, tpu.core_type = #tpu.core_type<tc>, window_params = [{transform_indices = @transform_0, window_bounds = array<i64: 16, 256>}, {pipeline_mode = #tpu.pipeline_mode<synchronous>, transform_indices = @transform_1, window_bounds = array<i64: 8, 16>}, {pipeline_mode = #tpu.pipeline_mode<synchronous>, transform_indices = @transform_2, window_bounds = array<i64: 8, 1>}, {pipeline_mode = #tpu.pipeline_mode<synchronous>, transform_indices = @transform_3, window_bounds = array<i64: 2, 8>}, {pipeline_mode = #tpu.pipeline_mode<synchronous>, transform_indices = @transform_4, window_bounds = array<i64: 2, 1>}, {transform_indices = @transform_5, window_bounds = array<i64: 2, 256>}, {transform_indices = @transform_6, window_bounds = array<i64: 2, 256>}]} {
    %c0 = arith.constant 0 : index
    %c0_0 = arith.constant 0 : index
    %0 = vector.load %arg2[%c0, %c0_0] : memref<8x16xbf16, #tpu.memory_space<vmem>>, vector<8x16xbf16>
    %c0_1 = arith.constant 0 : index
    %c0_2 = arith.constant 0 : index
    %1 = vector.load %arg1[%c0_1, %c0_2] : memref<16x256xbf16, #tpu.memory_space<vmem>>, vector<16x256xbf16>
    %cst = arith.constant dense<0.000000e+00> : vector<8x256xf32>
    %2 = tpu.matmul %0, %1, %cst {dimension_numbers = #tpu.dot_dimension_numbers<[1], [0], [0], [1], [0, 0, 1, 1], [], []>} : vector<8x16xbf16>, vector<16x256xbf16>, vector<8x256xf32> -> vector<8x256xf32>
    %c0_3 = arith.constant 0 : index
    %c0_4 = arith.constant 0 : index
    %3 = vector.load %arg3[%c0_3, %c0_4] : memref<8x1xf32, #tpu.memory_space<vmem>>, vector<8x1xf32>
    %4 = vector.broadcast %3 : vector<8x1xf32> to vector<8x256xf32>
    %5 = arith.addf %2, %4 : vector<8x256xf32>
    %cst_5 = arith.constant 0.000000e+00 : f32
    %6 = vector.broadcast %cst_5 : f32 to vector<8x256xf32>
    %7 = arith.maximumf %5, %6 : vector<8x256xf32>
    %c0_6 = arith.constant 0 : index
    %c0_7 = arith.constant 0 : index
    %8 = vector.load %arg4[%c0_6, %c0_7] : memref<2x8xbf16, #tpu.memory_space<vmem>>, vector<2x8xbf16>
    %9 = arith.truncf %7 : vector<8x256xf32> to vector<8x256xbf16>
    %cst_8 = arith.constant dense<0.000000e+00> : vector<2x256xf32>
    %10 = tpu.matmul %8, %9, %cst_8 {dimension_numbers = #tpu.dot_dimension_numbers<[1], [0], [0], [1], [0, 0, 1, 1], [], []>} : vector<2x8xbf16>, vector<8x256xbf16>, vector<2x256xf32> -> vector<2x256xf32>
    %c0_9 = arith.constant 0 : index
    %c0_10 = arith.constant 0 : index
    %11 = vector.load %arg5[%c0_9, %c0_10] : memref<2x1xf32, #tpu.memory_space<vmem>>, vector<2x1xf32>
    %12 = vector.broadcast %11 : vector<2x1xf32> to vector<2x256xf32>
    %13 = arith.addf %10, %12 : vector<2x256xf32>
    %14 = vector.extract_strided_slice %13 {offsets = [0, 0], sizes = [1, 256], strides = [1, 1]} : vector<2x256xf32> to vector<1x256xf32>
    %15 = vector.extract_strided_slice %13 {offsets = [1, 0], sizes = [1, 256], strides = [1, 1]} : vector<2x256xf32> to vector<1x256xf32>
    %c0_11 = arith.constant 0 : index
    %c0_12 = arith.constant 0 : index
    %16 = vector.load %arg6[%c0_11, %c0_12] : memref<2x256xf32, #tpu.memory_space<vmem>>, vector<1x256xf32>
    %c1 = arith.constant 1 : index
    %c0_13 = arith.constant 0 : index
    %17 = vector.load %arg6[%c1, %c0_13] : memref<2x256xf32, #tpu.memory_space<vmem>>, vector<1x256xf32>
    %cst_14 = arith.constant 1.000000e+00 : f32
    %18 = vector.broadcast %cst_14 : f32 to vector<1x256xf32>
    %19 = arith.addf %18, %14 : vector<1x256xf32>
    %20 = arith.mulf %16, %19 : vector<1x256xf32>
    %21 = arith.mulf %17, %15 : vector<1x256xf32>
    %22 = arith.subf %20, %21 : vector<1x256xf32>
    %c0_15 = arith.constant 0 : index
    %c0_16 = arith.constant 0 : index
    %23 = vector.load %arg7[%c0_15, %c0_16] : memref<2x256xf32, #tpu.memory_space<vmem>>, vector<1x256xf32>
    tpu.vector_store %arg7[%c0_15, %c0_16], %22 {strides = array<i32>} : memref<2x256xf32, #tpu.memory_space<vmem>>, vector<1x256xf32>,
    %24 = arith.mulf %16, %15 : vector<1x256xf32>
    %cst_17 = arith.constant 1.000000e+00 : f32
    %25 = vector.broadcast %cst_17 : f32 to vector<1x256xf32>
    %26 = arith.addf %25, %14 : vector<1x256xf32>
    %27 = arith.mulf %17, %26 : vector<1x256xf32>
    %28 = arith.addf %24, %27 : vector<1x256xf32>
    %c1_18 = arith.constant 1 : index
    %c0_19 = arith.constant 0 : index
    %29 = vector.load %arg7[%c1_18, %c0_19] : memref<2x256xf32, #tpu.memory_space<vmem>>, vector<1x256xf32>
    tpu.vector_store %arg7[%c1_18, %c0_19], %28 {strides = array<i32>} : memref<2x256xf32, #tpu.memory_space<vmem>>, vector<1x256xf32>,
    return
  }
  func.func @transform_0(%arg0: i32) -> (i32, i32) {
    %c0_i32 = arith.constant 0 : i32
    %c0_i32_0 = arith.constant 0 : i32
    return %c0_i32, %arg0 : i32, i32
  }
  func.func @transform_1(%arg0: i32) -> (i32, i32) {
    %c0_i32 = arith.constant 0 : i32
    %c0_i32_0 = arith.constant 0 : i32
    %c0_i32_1 = arith.constant 0 : i32
    return %c0_i32, %c0_i32_0 : i32, i32
  }
  func.func @transform_2(%arg0: i32) -> (i32, i32) {
    %c0_i32 = arith.constant 0 : i32
    %c0_i32_0 = arith.constant 0 : i32
    %c0_i32_1 = arith.constant 0 : i32
    return %c0_i32, %c0_i32_0 : i32, i32
  }
  func.func @transform_3(%arg0: i32) -> (i32, i32) {
    %c0_i32 = arith.constant 0 : i32
    %c0_i32_0 = arith.constant 0 : i32
    %c0_i32_1 = arith.constant 0 : i32
    return %c0_i32, %c0_i32_0 : i32, i32
  }
  func.func @transform_4(%arg0: i32) -> (i32, i32) {
    %c0_i32 = arith.constant 0 : i32
    %c0_i32_0 = arith.constant 0 : i32
    %c0_i32_1 = arith.constant 0 : i32
    return %c0_i32, %c0_i32_0 : i32, i32
  }
  func.func @transform_5(%arg0: i32) -> (i32, i32) {
    %c0_i32 = arith.constant 0 : i32
    %c0_i32_0 = arith.constant 0 : i32
    return %c0_i32, %arg0 : i32, i32
  }
  func.func @transform_6(%arg0: i32) -> (i32, i32) {
    %c0_i32 = arith.constant 0 : i32
    %c0_i32_0 = arith.constant 0 : i32
    return %c0_i32, %arg0 : i32, i32
  }
}

</mosaic_0001>

<llo_original>
// kernel: _lambda_.4
$region0: #{_lambda_.4}
  #allocation0 [shape = 'u32[]', space=smem, size = 0x4, offset = 0x4, fixed_abs, tag = 'smem constant byte address 0x4 - core index']
  #allocation1 [shape = 'u32[144,128]{1,0:T(1,128)}', space=vmem, size = 0x12000, scoped, tag = 'internal scratch']
  %s0 = inlined_call_operand.vmem [shape: bf16[6,512], index: 0, kind: input, shape index: {}]
  %s1 = inlined_call_operand.vmem [shape: bf16[8,6], index: 1, kind: input, shape index: {}]
  %s2 = inlined_call_operand.vmem [shape: f32[8,1], index: 2, kind: input, shape index: {}]
  %s3 = inlined_call_operand.vmem [shape: bf16[16,8], index: 3, kind: input, shape index: {}]
  %s4 = inlined_call_operand.vmem [shape: f32[16,1], index: 4, kind: input, shape index: {}]
  %s5 = inlined_call_operand.vmem [shape: f32[16,512], index: 5, kind: output, shape index: {}]
  %s6 = sld [smem:[#allocation0]]
  $region72: #{_lambda_.4} parent=0
    _
  %s8 = ssub.s32 1, %s6
  %s9 = scalar_select 0, %s8, %s6
  $region1: #{_lambda_.4} parent=0
    #allocation2 [shape = 'u8[32768]{0}', space=vmem, size = 0x8000, scoped, tag = 'output window, operand 0']
    loop: start=0, step=1, limit=4
    $region2: #{_lambda_.4} parent=1 // loop_pre_header
      _
    $region3: #{_lambda_.4} parent=1 // loop_header
      %s11 = sphi 0, %s15
      %p12 = scmp.ge.s32.totalorder %s11, 4
      %s21 = sphi 0, %s23
      %s24 = sphi 0, %s21
      %s25 = sphi 0, %s24
      %s41 = sphi 0, %s25
      %s45 = sphi 0, %s45
      %s47 = sphi 0, %s45
      %s48 = sphi 0, %s47
      %s62 = sphi 0, %s48
      %s66 = sphi 0, %s66
      %s68 = sphi 0, %s66
      %s69 = sphi 0, %s68
      %s83 = sphi 0, %s69
      %s87 = sphi 0, %s87
      %s89 = sphi 0, %s87
      %s90 = sphi 0, %s89
      %s104 = sphi 0, %s90
      %s108 = sphi 0, %s108
      %s110 = sphi 0, %s108
      %s111 = sphi 0, %s110
      %s125 = sphi 0, %s111
      %s131 = sphi 0, %s133
      %s134 = sphi 0, %s131
      %s135 = sphi 0, %s134
      %s151 = sphi 0, %s135
    $region4: #{_lambda_.4} parent=1 // loop_header_branch
      %14 = sbr.rel (%p12) target = $region8
    $region5: #{_lambda_.4} parent=1 // loop_body
      %s16 = ssub.s32 %s11, 1
      %s17 = ssub.s32 %s11, 2
      %s18 = sadd.s32 %s11, 1
      %s19 = ssub.s32 %s11, %s18
      %p20 = scmp.eq.s32.totalorder %s19, 0
      %s22 = sadd.s32 %s21, 1
      %s23 = scalar_select %p20, %s21, %s22
      %p26 = pneg %p20
      %p27 = scmp.eq.s32.totalorder %s11, 1
      %p28 = por %p26, %p27
      %p29 = scmp.ne.s32.totalorder %s21, %s24
      %p30 = scmp.eq.s32.totalorder %s11, 0
      %p31 = por %p29, %p30
      %p32 = scmp.ne.s32.totalorder %s21, %s24
      %p33 = scmp.eq.s32.totalorder %s16, 1
      %p34 = por %p32, %p33
      %p35 = scmp.ne.s32.totalorder %s24, %s25
      %p36 = scmp.eq.s32.totalorder %s16, 0
      %p37 = por %p35, %p36
      %p38 = scmp.ne.s32.totalorder %s24, %s25
      %p39 = scmp.eq.s32.totalorder %s17, 1
      %p40 = por %p38, %p39
      %p42 = scmp.ne.s32.totalorder %s25, %s41
      %p43 = scmp.eq.s32.totalorder %s17, 0
      %p44 = por %p42, %p43
      %s46 = sadd.s32 %s45, 1
      %p49 = scmp.eq.s32.totalorder %s11, 1
      %p50 = scmp.ne.s32.totalorder %s45, %s47
      %p51 = scmp.eq.s32.totalorder %s11, 0
      %p52 = por %p50, %p51
      %p53 = scmp.ne.s32.totalorder %s45, %s47
      %p54 = scmp.eq.s32.totalorder %s16, 1
      %p55 = por %p53, %p54
      %p56 = scmp.ne.s32.totalorder %s47, %s48
      %p57 = scmp.eq.s32.totalorder %s16, 0
      %p58 = por %p56, %p57
      %p59 = scmp.ne.s32.totalorder %s47, %s48
      %p60 = scmp.eq.s32.totalorder %s17, 1
      %p61 = por %p59, %p60
      %p63 = scmp.ne.s32.totalorder %s48, %s62
      %p64 = scmp.eq.s32.totalorder %s17, 0
      %p65 = por %p63, %p64
      %s67 = sadd.s32 %s66, 1
      %p70 = scmp.eq.s32.totalorder %s11, 1
      %p71 = scmp.ne.s32.totalorder %s66, %s68
      %p72 = scmp.eq.s32.totalorder %s11, 0
      %p73 = por %p71, %p72
      %p74 = scmp.ne.s32.totalorder %s66, %s68
      %p75 = scmp.eq.s32.totalorder %s16, 1
      %p76 = por %p74, %p75
      %p77 = scmp.ne.s32.totalorder %s68, %s69
      %p78 = scmp.eq.s32.totalorder %s16, 0
      %p79 = por %p77, %p78
      %p80 = scmp.ne.s32.totalorder %s68, %s69
      %p81 = scmp.eq.s32.totalorder %s17, 1
      %p82 = por %p80, %p81
      %p84 = scmp.ne.s32.totalorder %s69, %s83
      %p85 = scmp.eq.s32.totalorder %s17, 0
      %p86 = por %p84, %p85
      %s88 = sadd.s32 %s87, 1
      %p91 = scmp.eq.s32.totalorder %s11, 1
      %p92 = scmp.ne.s32.totalorder %s87, %s89
      %p93 = scmp.eq.s32.totalorder %s11, 0
      %p94 = por %p92, %p93
      %p95 = scmp.ne.s32.totalorder %s87, %s89
      %p96 = scmp.eq.s32.totalorder %s16, 1
      %p97 = por %p95, %p96
      %p98 = scmp.ne.s32.totalorder %s89, %s90
      %p99 = scmp.eq.s32.totalorder %s16, 0
      %p100 = por %p98, %p99
      %p101 = scmp.ne.s32.totalorder %s89, %s90
      %p102 = scmp.eq.s32.totalorder %s17, 1
      %p103 = por %p101, %p102
      %p105 = scmp.ne.s32.totalorder %s90, %s104
      %p106 = scmp.eq.s32.totalorder %s17, 0
      %p107 = por %p105, %p106
      %s109 = sadd.s32 %s108, 1
      %p112 = scmp.eq.s32.totalorder %s11, 1
      %p113 = scmp.ne.s32.totalorder %s108, %s110
      %p114 = scmp.eq.s32.totalorder %s11, 0
      %p115 = por %p113, %p114
      %p116 = scmp.ne.s32.totalorder %s108, %s110
      %p117 = scmp.eq.s32.totalorder %s16, 1
      %p118 = por %p116, %p117
      %p119 = scmp.ne.s32.totalorder %s110, %s111
      %p120 = scmp.eq.s32.totalorder %s16, 0
      %p121 = por %p119, %p120
      %p122 = scmp.ne.s32.totalorder %s110, %s111
      %p123 = scmp.eq.s32.totalorder %s17, 1
      %p124 = por %p122, %p123
      %p126 = scmp.ne.s32.totalorder %s111, %s125
      %p127 = scmp.eq.s32.totalorder %s17, 0
      %p128 = por %p126, %p127
      %s129 = ssub.s32 %s11, %s18
      %p130 = scmp.eq.s32.totalorder %s129, 0
      %s132 = sadd.s32 %s131, 1
      %s133 = scalar_select %p130, %s131, %s132
      %p136 = pneg %p130
      %p137 = scmp.eq.s32.totalorder %s11, 1
      %p138 = por %p136, %p137
      %p139 = scmp.ne.s32.totalorder %s131, %s134
      %p140 = scmp.eq.s32.totalorder %s11, 0
      %p141 = por %p139, %p140
      %p142 = scmp.ne.s32.totalorder %s131, %s134
      %p143 = scmp.eq.s32.totalorder %s16, 1
      %p144 = por %p142, %p143
      %p145 = scmp.ne.s32.totalorder %s134, %s135
      %p146 = scmp.eq.s32.totalorder %s16, 0
      %p147 = por %p145, %p146
      %p148 = scmp.ne.s32.totalorder %s134, %s135
      %p149 = scmp.eq.s32.totalorder %s17, 1
      %p150 = por %p148, %p149
      %p152 = scmp.ne.s32.totalorder %s135, %s151
      %p153 = scmp.eq.s32.totalorder %s17, 0
      %p154 = por %p152, %p153
      %p155 = scmp.le.s32.totalorder 1, %s11
      %p156 = scmp.lt.s32.totalorder %s11, 3
      %p157 = pnand %p155, %p156
      %p158 = pneg %p157
      // Predicated region
      $region9: #{_lambda_.4} parent=5 // pred_check
        _
      $region10: #{_lambda_.4} parent=5 // pred_check_branch
        %160 = sbr.rel (%p157) target = $region12
      $region11: #{_lambda_.4} parent=5 // pred_region
        %s161 = ssub.s32 %s11, 1
        // Predicated region
        $region13: #{_lambda_.4} parent=11 // pred_check
          %p162 = pneg %p58
        $region14: #{_lambda_.4} parent=11 // pred_check_branch
          %164 = sbr.rel (%p162) target = $region16
        $region15: #{_lambda_.4} parent=11 // pred_region
          _
        $region16: #{_lambda_.4} parent=11 // pred_fallthru
          _
        // Predicated region
        $region17: #{_lambda_.4} parent=11 // pred_check
          %p165 = pneg %p79
        $region18: #{_lambda_.4} parent=11 // pred_check_branch
          %167 = sbr.rel (%p165) target = $region20
        $region19: #{_lambda_.4} parent=11 // pred_region
          _
        $region20: #{_lambda_.4} parent=11 // pred_fallthru
          _
        // Predicated region
        $region21: #{_lambda_.4} parent=11 // pred_check
          %p168 = pneg %p100
        $region22: #{_lambda_.4} parent=11 // pred_check_branch
          %170 = sbr.rel (%p168) target = $region24
        $region23: #{_lambda_.4} parent=11 // pred_region
          _
        $region24: #{_lambda_.4} parent=11 // pred_fallthru
          _
        // Predicated region
        $region25: #{_lambda_.4} parent=11 // pred_check
          %p171 = pneg %p121
        $region26: #{_lambda_.4} parent=11 // pred_check_branch
          %173 = sbr.rel (%p171) target = $region28
        $region27: #{_lambda_.4} parent=11 // pred_region
          _
        $region28: #{_lambda_.4} parent=11 // pred_fallthru
          _
      $region12: #{_lambda_.4} parent=5 // pred_fallthru
        _
      %p174 = scmp.lt.s32.totalorder %s11, 2
      // Predicated region
      $region29: #{_lambda_.4} parent=5 // pred_check
        %p175 = pneg %p174
      $region30: #{_lambda_.4} parent=5 // pred_check_branch
        %177 = sbr.rel (%p175) target = $region32
      $region31: #{_lambda_.4} parent=5 // pred_region
        // Predicated region
        $region33: #{_lambda_.4} parent=31 // pred_check
          %p178 = pneg %p31
        $region34: #{_lambda_.4} parent=31 // pred_check_branch
          %180 = sbr.rel (%p178) target = $region36
        $region35: #{_lambda_.4} parent=31 // pred_region
          %s181 = smul.u32 2, %s11
          %p182 = scmp.lt.s32.totalorder %s181, 3
          %s183 = scalar_select %p182, %s181, 3
          %s184 = smul.addr %s183, 4
          %s185 = scalar_lea.vmem %s0, %s184
          %s186 = smul.u32 2, %s11
        $region36: #{_lambda_.4} parent=31 // pred_fallthru
          _
      $region32: #{_lambda_.4} parent=5 // pred_fallthru
        _
      %p187 = scmp.le.s32.totalorder 1, %s11
      %p188 = scmp.lt.s32.totalorder %s11, 3
      %p189 = pnand %p187, %p188
      %p190 = pneg %p189
      // Predicated region
      $region37: #{_lambda_.4} parent=5 // pred_check
        _
      $region38: #{_lambda_.4} parent=5 // pred_check_branch
        %192 = sbr.rel (%p189) target = $region40
      $region39: #{_lambda_.4} parent=5 // pred_region
        %s193 = ssub.s32 %s11, 1
        %s194 = smul.u32 2, %s16
        %p195 = scmp.lt.s32.totalorder %s194, 3
        %s196 = scalar_select %p195, %s194, 3
        %s197 = smul.addr %s196, 4
        %s198 = scalar_lea.vmem %s0, %s197
        %p199 = pneg %p37
        %p200 = pneg %p34
        %p201 = pneg %p58
        %p202 = pneg %p55
        %p203 = pneg %p79
        %p204 = pneg %p76
        %p205 = pneg %p100
        %p206 = pneg %p97
        %p207 = pneg %p121
        %p208 = pneg %p118
        %p209 = pneg %p147
        %p210 = pneg %p144
        %s211 = sand.u32 %s134, 1
        %s212 = sand.u32 %s134, 1
        %s213 = smul.addr %s212, 32
        %s214 = scalar_lea.vmem [#allocation2], %s213
        %s215 = smul.u32 2, %s16
        %p216 = scmp.lt.s32.totalorder %s215, 3
        %s217 = scalar_select %p216, %s215, 3
        %s218 = smul.addr %s217, 4
        %s219 = scalar_lea.vmem %s0, %s218
        %s220 = smul.u32 2, %s16
        %s221 = smul.u32 2, %s16
        %v223 = vld [vmem:[%s1] sm:$0xf]
        %v224 = vld [vmem:[%s219] sm:$0x77]
        %v225 = vld [vmem:[%s2] sm:$0xff]
        %227 = vset.pattern.permute.xlu0 0
        %228 = vperm.xlu0 %227, %v225
        %v229 = vpop.permute.xlu0 %228
        %v232 = vunpack.c.l.b16 %v224
        %v233 = vunpack.c.h.b16 %v224
        %v234 = vpack.c.b16 %v232, %v232
        %v235 = vpack.c.b16 %v233, %v233
        %vm236 = vcmask 48128
        %v238 = vsel %vm236, %v223, 0
        %vm240 = vcmask 1042432
        %v242 = vsel %vm240, %v234, 0
        %v245 = vsel %vm240, %v235, 0
        %247 = vmatprep.subr.bf16.mxu0 %v245
        %248 = vmatpush1.bf16.msra.mxu0 %v242
        %249 = vmatprep.subr.bf16.mxu0 0
        %250 = vmatpush1.bf16.msra.mxu0 0
        %251 = vmatprep.subr.bf16.mxu0 0
        %252 = vmatpush1.bf16.msra.mxu0 0
        %253 = vmatprep.subr.bf16.mxu0 0
        %254 = vmatpush1.bf16.msra.mxu0 0
        %255 = vmatprep.subr.bf16.mxu0 0
        %256 = vmatpush1.bf16.msra.mxu0 0
        %257 = vmatprep.subr.bf16.mxu0 0
        %258 = vmatpush1.bf16.msra.mxu0 0
        %259 = vmatprep.subr.bf16.mxu0 0
        %260 = vmatpush1.bf16.msra.mxu0 0
        %261 = vmatprep.subr.bf16.mxu0 0
        %262 = vmatpush1.bf16.msra.mxu0 0
        %263 = vmatprep.subr.bf16.mxu0 0
        %264 = vmatpush1.bf16.msra.mxu0 0
        %265 = vmatprep.subr.bf16.mxu0 0
        %266 = vmatpush1.bf16.msra.mxu0 0
        %267 = vmatprep.subr.bf16.mxu0 0
        %268 = vmatpush1.bf16.msra.mxu0 0
        %269 = vmatprep.subr.bf16.mxu0 0
        %270 = vmatpush1.bf16.msra.mxu0 0
        %271 = vmatprep.subr.bf16.mxu0 0
        %272 = vmatpush1.bf16.msra.mxu0 0
        %273 = vmatprep.subr.bf16.mxu0 0
        %274 = vmatpush1.bf16.msra.mxu0 0
        %275 = vmatprep.subr.bf16.mxu0 0
        %276 = vmatpush1.bf16.msra.mxu0 0
        %277 = vmatprep.subr.bf16.mxu0 0
        %278 = vmatpush1.bf16.msra.mxu0 0
        %279 = vmatprep.mubr.bf16.mxu0 0
        %280 = vmatmul.mubr.bf16.gmra.mrb[0].mxu0 %v238
        %v281 = vpop.f32.mrb[0].mxu0
        %v282 = vadd.f32 %v229, %v281
        %v283 = vpop.f32.mrb[0].mxu0
        %v284 = vadd.f32 %v229, %v283
        %v285 = vpop.f32.mrb[0].mxu0
        %v286 = vpop.f32.mrb[0].mxu0
        %287 = vdwg.mxu0
        %v288 = vmax.f32 %v282, 0.0
        %v289 = vmax.f32 %v284, 0.0
        %v290 = vld [vmem:[%s3] sm:$0xf]
        %v291 = vld [vmem:[%s3 + $0x4] sm:$0xf]
        %v292 = vpack.c.bf16 %v288, %v288
        %v293 = vpack.c.bf16 %v289, %v289
        %v294 = vld [vmem:[%s4] sm:$0xff]
        %v295 = vld [vmem:[%s4 + $0x8] sm:$0xff]
        %297 = vset.pattern.permute.xlu0 0
        %298 = vperm.xlu0 %297, %v294
        %v299 = vpop.permute.xlu0 %298
        %302 = vset.pattern.permute.xlu0 0
        %303 = vperm.xlu0 %302, %v295
        %v304 = vpop.permute.xlu0 %303
        %v308 = vunpack.c.l.b16 %v290
        %v309 = vunpack.c.l.b16 %v291
        %v310 = vpack.c.b16 %v309, %v308
        %vm311 = vcmask 64512
        %v313 = vsel %vm311, %v310, 0
        %vm315 = vcmask 1043456
        %v317 = vsel %vm315, %v292, 0
        %v320 = vsel %vm315, %v293, 0
        %322 = vmatprep.subr.bf16.mxu0 %v320
        %323 = vmatpush1.bf16.msra.mxu0 %v317
        %324 = vmatprep.subr.bf16.mxu0 0
        %325 = vmatpush1.bf16.msra.mxu0 0
        %326 = vmatprep.subr.bf16.mxu0 0
        %327 = vmatpush1.bf16.msra.mxu0 0
        %328 = vmatprep.subr.bf16.mxu0 0
        %329 = vmatpush1.bf16.msra.mxu0 0
        %330 = vmatprep.subr.bf16.mxu0 0
        %331 = vmatpush1.bf16.msra.mxu0 0
        %332 = vmatprep.subr.bf16.mxu0 0
        %333 = vmatpush1.bf16.msra.mxu0 0
        %334 = vmatprep.subr.bf16.mxu0 0
        %335 = vmatpush1.bf16.msra.mxu0 0
        %336 = vmatprep.subr.bf16.mxu0 0
        %337 = vmatpush1.bf16.msra.mxu0 0
        %338 = vmatprep.subr.bf16.mxu0 0
        %339 = vmatpush1.bf16.msra.mxu0 0
        %340 = vmatprep.subr.bf16.mxu0 0
        %341 = vmatpush1.bf16.msra.mxu0 0
        %342 = vmatprep.subr.bf16.mxu0 0
        %343 = vmatpush1.bf16.msra.mxu0 0
        %344 = vmatprep.subr.bf16.mxu0 0
        %345 = vmatpush1.bf16.msra.mxu0 0
        %346 = vmatprep.subr.bf16.mxu0 0
        %347 = vmatpush1.bf16.msra.mxu0 0
        %348 = vmatprep.subr.bf16.mxu0 0
        %349 = vmatpush1.bf16.msra.mxu0 0
        %350 = vmatprep.subr.bf16.mxu0 0
        %351 = vmatpush1.bf16.msra.mxu0 0
        %352 = vmatprep.subr.bf16.mxu0 0
        %353 = vmatpush1.bf16.msra.mxu0 0
        %354 = vmatprep.mubr.bf16.mxu0 0
        %355 = vmatmul.mubr.bf16.gmra.mrb[0].mxu0 %v313
        %v356 = vpop.f32.mrb[0].mxu0
        %v357 = vadd.f32 %v299, %v356
        %v358 = vpop.f32.mrb[0].mxu0
        %v359 = vadd.f32 %v299, %v358
        %v360 = vpop.f32.mrb[0].mxu0
        %v361 = vadd.f32 %v304, %v360
        %v362 = vpop.f32.mrb[0].mxu0
        %v363 = vadd.f32 %v304, %v362
        %364 = vdwg.mxu0
        %365 = vst [vmem:[%s214] sm:$0xff] %v357
        %366 = vst [vmem:[%s214 + $0x8] sm:$0xff] %v359
        %367 = vst [vmem:[%s214 + $0x10] sm:$0xff] %v361
        %368 = vst [vmem:[%s214 + $0x18] sm:$0xff] %v363
        %s369 = sand.u32 %s134, 1
        %s370 = sand.u32 %s134, 1
        %s371 = smul.addr %s370, 32
        %s372 = scalar_lea.vmem [#allocation2], %s371
        // Predicated region
        $region41: #{_lambda_.4} parent=39 // pred_check
          %p373 = pneg %p144
        $region42: #{_lambda_.4} parent=39 // pred_check_branch
          %375 = sbr.rel (%p373) target = $region44
        $region43: #{_lambda_.4} parent=39 // pred_region
          %s376 = smul.u32 2, %s16
          %s377 = smul.addr %s376, 8
          %s378 = scalar_lea.vmem %s5, %s377
          // Predicated region
          $region45: #{_lambda_.4} parent=43 // pred_check
            _
          $region46: #{_lambda_.4} parent=43 // pred_check_branch
            %380 = sbr.rel (0) target = $region48
          $region47: #{_lambda_.4} parent=43 // pred_region
            // Predicated region
            $region49: #{_lambda_.4} parent=47 // pred_check
              _
            $region50: #{_lambda_.4} parent=47 // pred_check_branch
              %382 = sbr.rel (0) target = $region52
            $region51: #{_lambda_.4} parent=47 // pred_region
              loop: start=0, step=1, limit=1
              $region53: #{_lambda_.4} parent=51 // loop_pre_header
                _
              $region54: #{_lambda_.4} parent=51 // loop_header
                %s384 = sphi 0, %s388
                %p385 = scmp.ge.s32.totalorder %s384, 1
                %s389 = sphi %s372, %s372
                %s390 = sphi %s378, %s378
              $region55: #{_lambda_.4} parent=51 // loop_header_branch
                %387 = sbr.rel (%p385) target = $region59
              $region56: #{_lambda_.4} parent=51 // loop_body
                %v391 = vld [vmem:[%s389] sm:$0xff]
                %392 = vst [vmem:[%s390] sm:$0xff] %v391
                %v393 = vld [vmem:[%s389 + $0x8] sm:$0xff]
                %394 = vst [vmem:[%s390 + $0x8] sm:$0xff] %v393
                %v395 = vld [vmem:[%s389 + $0x10] sm:$0xff]
                %396 = vst [vmem:[%s390 + $0x20] sm:$0xff] %v395
                %v397 = vld [vmem:[%s389 + $0x18] sm:$0xff]
                %398 = vst [vmem:[%s390 + $0x28] sm:$0xff] %v397
              $region57: #{_lambda_.4} parent=51 // loop_footer
                %s388 = sadd.s32 1, %s384
              $region58: #{_lambda_.4} parent=51 // loop_footer_branch
                %383 = sbr.rel target = $region54
              $region59: #{_lambda_.4} parent=51 // loop_exit
                _
            $region52: #{_lambda_.4} parent=47 // pred_fallthru
              _
            // Predicated region
            $region60: #{_lambda_.4} parent=47 // pred_check
              _
            $region61: #{_lambda_.4} parent=47 // pred_check_branch
              %400 = sbr.rel target = $region63
            $region62: #{_lambda_.4} parent=47 // pred_region
              _
            $region63: #{_lambda_.4} parent=47 // pred_fallthru
              _
          $region48: #{_lambda_.4} parent=43 // pred_fallthru
            _
          %401 = vnop
        $region44: #{_lambda_.4} parent=39 // pred_fallthru
          _
      $region40: #{_lambda_.4} parent=5 // pred_fallthru
        _
      %p402 = scmp.le.s32.totalorder 2, %s11
      // Predicated region
      $region64: #{_lambda_.4} parent=5 // pred_check
        %p403 = pneg %p402
      $region65: #{_lambda_.4} parent=5 // pred_check_branch
        %405 = sbr.rel (%p403) target = $region67
      $region66: #{_lambda_.4} parent=5 // pred_region
        %s406 = ssub.s32 %s11, 2
        // Predicated region
        $region68: #{_lambda_.4} parent=66 // pred_check
          %p407 = pneg %p150
        $region69: #{_lambda_.4} parent=66 // pred_check_branch
          %409 = sbr.rel (%p407) target = $region71
        $region70: #{_lambda_.4} parent=66 // pred_region
          %s410 = sand.u32 %s135, 1
          %s411 = sand.u32 %s135, 1
          %s412 = smul.addr %s411, 32
          %s413 = scalar_lea.vmem [#allocation2], %s412
        $region71: #{_lambda_.4} parent=66 // pred_fallthru
          _
      $region67: #{_lambda_.4} parent=5 // pred_fallthru
        _
    $region6: #{_lambda_.4} parent=1 // loop_footer
      %s15 = sadd.s32 1, %s11
    $region7: #{_lambda_.4} parent=1 // loop_footer_branch
      %10 = sbr.rel target = $region3
    $region8: #{_lambda_.4} parent=1 // loop_exit
      _

// kernel: reverse.4
$region0: #{reverse.4}
  #allocation0 [shape = 's32[1]{0}', space=sflag, size = 0x4, scoped, tag = 'scoped memory for reverse.4']
  %s0 = inlined_call_operand.vmem [shape: f32[16,2,20,9], index: 0, kind: input, shape index: {}]
  %s1 = inlined_call_operand.vmem [shape: f32[16,2,20,9], index: 1, kind: output, shape index: {}]
  %s2 = scalar_lea.vmem %s0, 128
  %v3 = vld [vmem:[%s2] sm:$0xff]
  %4 = vst [vmem:[%s1] sm:$0xff] %v3
  %s5 = scalar_lea.vmem %s0, 272
  %v6 = vld [vmem:[%s5] sm:$0xff]
  %s7 = scalar_lea.vmem %s1, 144
  %8 = vst [vmem:[%s7] sm:$0xff] %v6
  %s9 = scalar_lea.vmem %s0, 112
  %v10 = vld [vmem:[%s9] sm:$0xff]
  %s11 = scalar_lea.vmem %s1, 16
  %12 = vst [vmem:[%s11] sm:$0xff] %v10
  %s13 = scalar_lea.vmem %s0, 256
  %v14 = vld [vmem:[%s13] sm:$0xff]
  %s15 = scalar_lea.vmem %s1, 160
  %16 = vst [vmem:[%s15] sm:$0xff] %v14
  %s17 = scalar_lea.vmem %s0, 96
  %v18 = vld [vmem:[%s17] sm:$0xff]
  %s19 = scalar_lea.vmem %s1, 32
  %20 = vst [vmem:[%s19] sm:$0xff] %v18
  %s21 = scalar_lea.vmem %s0, 240
  %v22 = vld [vmem:[%s21] sm:$0xff]
  %s23 = scalar_lea.vmem %s1, 176
  %24 = vst [vmem:[%s23] sm:$0xff] %v22
  %s25 = scalar_lea.vmem %s0, 80
  %v26 = vld [vmem:[%s25] sm:$0xff]
  %s27 = scalar_lea.vmem %s1, 48
  %28 = vst [vmem:[%s27] sm:$0xff] %v26
  %s29 = scalar_lea.vmem %s0, 224
  %v30 = vld [vmem:[%s29] sm:$0xff]
  %s31 = scalar_lea.vmem %s1, 192
  %32 = vst [vmem:[%s31] sm:$0xff] %v30
  %s33 = scalar_lea.vmem %s0, 64
  %v34 = vld [vmem:[%s33] sm:$0xff]
  %s35 = scalar_lea.vmem %s1, 64
  %36 = vst [vmem:[%s35] sm:$0xff] %v34
  %s37 = scalar_lea.vmem %s0, 208
  %v38 = vld [vmem:[%s37] sm:$0xff]
  %s39 = scalar_lea.vmem %s1, 208
  %40 = vst [vmem:[%s39] sm:$0xff] %v38
  %s41 = scalar_lea.vmem %s0, 48
  %v42 = vld [vmem:[%s41] sm:$0xff]
  %s43 = scalar_lea.vmem %s1, 80
  %44 = vst [vmem:[%s43] sm:$0xff] %v42
  %s45 = scalar_lea.vmem %s0, 192
  %v46 = vld [vmem:[%s45] sm:$0xff]
  %s47 = scalar_lea.vmem %s1, 224
  %48 = vst [vmem:[%s47] sm:$0xff] %v46
  %s49 = scalar_lea.vmem %s0, 32
  %v50 = vld [vmem:[%s49] sm:$0xff]
  %s51 = scalar_lea.vmem %s1, 96
  %52 = vst [vmem:[%s51] sm:$0xff] %v50
  %s53 = scalar_lea.vmem %s0, 176
  %v54 = vld [vmem:[%s53] sm:$0xff]
  %s55 = scalar_lea.vmem %s1, 240
  %56 = vst [vmem:[%s55] sm:$0xff] %v54
  %s57 = scalar_lea.vmem %s0, 16
  %v58 = vld [vmem:[%s57] sm:$0xff]
  %s59 = scalar_lea.vmem %s1, 112
  %60 = vst [vmem:[%s59] sm:$0xff] %v58
  %s61 = scalar_lea.vmem %s0, 160
  %v62 = vld [vmem:[%s61] sm:$0xff]
  %s63 = scalar_lea.vmem %s1, 256
  %64 = vst [vmem:[%s63] sm:$0xff] %v62
  %v65 = vld [vmem:[%s0] sm:$0xff]
  %s66 = scalar_lea.vmem %s1, 128
  %67 = vst [vmem:[%s66] sm:$0xff] %v65
  %s68 = scalar_lea.vmem %s0, 144
  %v69 = vld [vmem:[%s68] sm:$0xff]
  %s70 = scalar_lea.vmem %s1, 272
  %71 = vst [vmem:[%s70] sm:$0xff] %v69
  %s72 = scalar_lea.vmem %s0, 136
  %v73 = vld [vmem:[%s72] sm:$0xff]
  %s74 = scalar_lea.vmem %s1, 8
  %75 = vst [vmem:[%s74] sm:$0xff] %v73
  %s76 = scalar_lea.vmem %s0, 280
  %v77 = vld [vmem:[%s76] sm:$0xff]
  %s78 = scalar_lea.vmem %s1, 152
  %79 = vst [vmem:[%s78] sm:$0xff] %v77
  %s80 = scalar_lea.vmem %s0, 120
  %v81 = vld [vmem:[%s80] sm:$0xff]
  %s82 = scalar_lea.vmem %s1, 24
  %83 = vst [vmem:[%s82] sm:$0xff] %v81
  %s84 = scalar_lea.vmem %s0, 264
  %v85 = vld [vmem:[%s84] sm:$0xff]
  %s86 = scalar_lea.vmem %s1, 168
  %87 = vst [vmem:[%s86] sm:$0xff] %v85
  %s88 = scalar_lea.vmem %s0, 104
  %v89 = vld [vmem:[%s88] sm:$0xff]
  %s90 = scalar_lea.vmem %s1, 40
  %91 = vst [vmem:[%s90] sm:$0xff] %v89
  %s92 = scalar_lea.vmem %s0, 248
  %v93 = vld [vmem:[%s92] sm:$0xff]
  %s94 = scalar_lea.vmem %s1, 184
  %95 = vst [vmem:[%s94] sm:$0xff] %v93
  %s96 = scalar_lea.vmem %s0, 88
  %v97 = vld [vmem:[%s96] sm:$0xff]
  %s98 = scalar_lea.vmem %s1, 56
  %99 = vst [vmem:[%s98] sm:$0xff] %v97
  %s100 = scalar_lea.vmem %s0, 232
  %v101 = vld [vmem:[%s100] sm:$0xff]
  %s102 = scalar_lea.vmem %s1, 200
  %103 = vst [vmem:[%s102] sm:$0xff] %v101
  %s104 = scalar_lea.vmem %s0, 72
  %v105 = vld [vmem:[%s104] sm:$0xff]
  %s106 = scalar_lea.vmem %s1, 72
  %107 = vst [vmem:[%s106] sm:$0xff] %v105
  %s108 = scalar_lea.vmem %s0, 216
  %v109 = vld [vmem:[%s108] sm:$0xff]
  %s110 = scalar_lea.vmem %s1, 216
  %111 = vst [vmem:[%s110] sm:$0xff] %v109
  %s112 = scalar_lea.vmem %s0, 56
  %v113 = vld [vmem:[%s112] sm:$0xff]
  %s114 = scalar_lea.vmem %s1, 88
  %115 = vst [vmem:[%s114] sm:$0xff] %v113
  %s116 = scalar_lea.vmem %s0, 200
  %v117 = vld [vmem:[%s116] sm:$0xff]
  %s118 = scalar_lea.vmem %s1, 232
  %119 = vst [vmem:[%s118] sm:$0xff] %v117
  %s120 = scalar_lea.vmem %s0, 40
  %v121 = vld [vmem:[%s120] sm:$0xff]
  %s122 = scalar_lea.vmem %s1, 104
  %123 = vst [vmem:[%s122] sm:$0xff] %v121
  %s124 = scalar_lea.vmem %s0, 184
  %v125 = vld [vmem:[%s124] sm:$0xff]
  %s126 = scalar_lea.vmem %s1, 248
  %127 = vst [vmem:[%s126] sm:$0xff] %v125
  %s128 = scalar_lea.vmem %s0, 24
  %v129 = vld [vmem:[%s128] sm:$0xff]
  %s130 = scalar_lea.vmem %s1, 120
  %131 = vst [vmem:[%s130] sm:$0xff] %v129
  %s132 = scalar_lea.vmem %s0, 168
  %v133 = vld [vmem:[%s132] sm:$0xff]
  %s134 = scalar_lea.vmem %s1, 264
  %135 = vst [vmem:[%s134] sm:$0xff] %v133
  %s136 = scalar_lea.vmem %s0, 8
  %v137 = vld [vmem:[%s136] sm:$0xff]
  %s138 = scalar_lea.vmem %s1, 136
  %139 = vst [vmem:[%s138] sm:$0xff] %v137
  %s140 = scalar_lea.vmem %s0, 152
  %v141 = vld [vmem:[%s140] sm:$0xff]
  %s142 = scalar_lea.vmem %s1, 280
  %143 = vst [vmem:[%s142] sm:$0xff] %v141

// kernel: _lambda_.5
$region0: #{_lambda_.5}
  #allocation0 [shape = 'u32[]', space=smem, size = 0x4, offset = 0x4, fixed_abs, tag = 'smem constant byte address 0x4 - core index']
  #allocation1 [shape = 'u32[144,128]{1,0:T(1,128)}', space=vmem, size = 0x12000, scoped, tag = 'internal scratch']
  %s0 = inlined_call_operand.vmem [shape: bf16[16,1024], index: 0, kind: input, shape index: {}]
  %s1 = inlined_call_operand.vmem [shape: bf16[16,16], index: 1, kind: input, shape index: {}]
  %s2 = inlined_call_operand.vmem [shape: f32[16,1], index: 2, kind: input, shape index: {}]
  %s3 = inlined_call_operand.vmem [shape: bf16[16,1024], index: 3, kind: input, shape index: {}]
  %s4 = inlined_call_operand.vmem [shape: f32[16,1024], index: 4, kind: output, shape index: {}]
  %s5 = sld [smem:[#allocation0]]
  $region114: #{_lambda_.5} parent=0
    _
  %s7 = ssub.s32 1, %s5
  %s8 = scalar_select 0, %s7, %s5
  $region1: #{_lambda_.5} parent=0
    #allocation2 [shape = 'u8[32768]{0}', space=vmem, size = 0x8000, scoped, tag = 'input window, operand 0']
    #allocation3 [shape = 'u8[32768]{0}', space=vmem, size = 0x8000, scoped, tag = 'input window, operand 3']
    #allocation4 [shape = 'u8[65536]{0}', space=vmem, size = 0x10000, scoped, tag = 'output window, operand 0']
    loop: start=0, step=1, limit=4
    $region2: #{_lambda_.5} parent=1 // loop_pre_header
      _
    $region3: #{_lambda_.5} parent=1 // loop_header
      %s10 = sphi 0, %s14
      %p11 = scmp.ge.s32.totalorder %s10, 4
      %s20 = sphi 0, %s22
      %s23 = sphi 0, %s20
      %s24 = sphi 0, %s23
      %s40 = sphi 0, %s24
      %s44 = sphi 0, %s44
      %s46 = sphi 0, %s44
      %s47 = sphi 0, %s46
      %s61 = sphi 0, %s47
      %s65 = sphi 0, %s65
      %s67 = sphi 0, %s65
      %s68 = sphi 0, %s67
      %s82 = sphi 0, %s68
      %s88 = sphi 0, %s90
      %s91 = sphi 0, %s88
      %s92 = sphi 0, %s91
      %s108 = sphi 0, %s92
      %s114 = sphi 0, %s116
      %s117 = sphi 0, %s114
      %s118 = sphi 0, %s117
      %s134 = sphi 0, %s118
    $region4: #{_lambda_.5} parent=1 // loop_header_branch
      %13 = sbr.rel (%p11) target = $region8
    $region5: #{_lambda_.5} parent=1 // loop_body
      %s15 = ssub.s32 %s10, 1
      %s16 = ssub.s32 %s10, 2
      %s17 = sadd.s32 %s10, 1
      %s18 = ssub.s32 %s10, %s17
      %p19 = scmp.eq.s32.totalorder %s18, 0
      %s21 = sadd.s32 %s20, 1
      %s22 = scalar_select %p19, %s20, %s21
      %p25 = pneg %p19
      %p26 = scmp.eq.s32.totalorder %s10, 1
      %p27 = por %p25, %p26
      %p28 = scmp.ne.s32.totalorder %s20, %s23
      %p29 = scmp.eq.s32.totalorder %s10, 0
      %p30 = por %p28, %p29
      %p31 = scmp.ne.s32.totalorder %s20, %s23
      %p32 = scmp.eq.s32.totalorder %s15, 1
      %p33 = por %p31, %p32
      %p34 = scmp.ne.s32.totalorder %s23, %s24
      %p35 = scmp.eq.s32.totalorder %s15, 0
      %p36 = por %p34, %p35
      %p37 = scmp.ne.s32.totalorder %s23, %s24
      %p38 = scmp.eq.s32.totalorder %s16, 1
      %p39 = por %p37, %p38
      %p41 = scmp.ne.s32.totalorder %s24, %s40
      %p42 = scmp.eq.s32.totalorder %s16, 0
      %p43 = por %p41, %p42
      %s45 = sadd.s32 %s44, 1
      %p48 = scmp.eq.s32.totalorder %s10, 1
      %p49 = scmp.ne.s32.totalorder %s44, %s46
      %p50 = scmp.eq.s32.totalorder %s10, 0
      %p51 = por %p49, %p50
      %p52 = scmp.ne.s32.totalorder %s44, %s46
      %p53 = scmp.eq.s32.totalorder %s15, 1
      %p54 = por %p52, %p53
      %p55 = scmp.ne.s32.totalorder %s46, %s47
      %p56 = scmp.eq.s32.totalorder %s15, 0
      %p57 = por %p55, %p56
      %p58 = scmp.ne.s32.totalorder %s46, %s47
      %p59 = scmp.eq.s32.totalorder %s16, 1
      %p60 = por %p58, %p59
      %p62 = scmp.ne.s32.totalorder %s47, %s61
      %p63 = scmp.eq.s32.totalorder %s16, 0
      %p64 = por %p62, %p63
      %s66 = sadd.s32 %s65, 1
      %p69 = scmp.eq.s32.totalorder %s10, 1
      %p70 = scmp.ne.s32.totalorder %s65, %s67
      %p71 = scmp.eq.s32.totalorder %s10, 0
      %p72 = por %p70, %p71
      %p73 = scmp.ne.s32.totalorder %s65, %s67
      %p74 = scmp.eq.s32.totalorder %s15, 1
      %p75 = por %p73, %p74
      %p76 = scmp.ne.s32.totalorder %s67, %s68
      %p77 = scmp.eq.s32.totalorder %s15, 0
      %p78 = por %p76, %p77
      %p79 = scmp.ne.s32.totalorder %s67, %s68
      %p80 = scmp.eq.s32.totalorder %s16, 1
      %p81 = por %p79, %p80
      %p83 = scmp.ne.s32.totalorder %s68, %s82
      %p84 = scmp.eq.s32.totalorder %s16, 0
      %p85 = por %p83, %p84
      %s86 = ssub.s32 %s10, %s17
      %p87 = scmp.eq.s32.totalorder %s86, 0
      %s89 = sadd.s32 %s88, 1
      %s90 = scalar_select %p87, %s88, %s89
      %p93 = pneg %p87
      %p94 = scmp.eq.s32.totalorder %s10, 1
      %p95 = por %p93, %p94
      %p96 = scmp.ne.s32.totalorder %s88, %s91
      %p97 = scmp.eq.s32.totalorder %s10, 0
      %p98 = por %p96, %p97
      %p99 = scmp.ne.s32.totalorder %s88, %s91
      %p100 = scmp.eq.s32.totalorder %s15, 1
      %p101 = por %p99, %p100
      %p102 = scmp.ne.s32.totalorder %s91, %s92
      %p103 = scmp.eq.s32.totalorder %s15, 0
      %p104 = por %p102, %p103
      %p105 = scmp.ne.s32.totalorder %s91, %s92
      %p106 = scmp.eq.s32.totalorder %s16, 1
      %p107 = por %p105, %p106
      %p109 = scmp.ne.s32.totalorder %s92, %s108
      %p110 = scmp.eq.s32.totalorder %s16, 0
      %p111 = por %p109, %p110
      %s112 = ssub.s32 %s10, %s17
      %p113 = scmp.eq.s32.totalorder %s112, 0
      %s115 = sadd.s32 %s114, 1
      %s116 = scalar_select %p113, %s114, %s115
      %p119 = pneg %p113
      %p120 = scmp.eq.s32.totalorder %s10, 1
      %p121 = por %p119, %p120
      %p122 = scmp.ne.s32.totalorder %s114, %s117
      %p123 = scmp.eq.s32.totalorder %s10, 0
      %p124 = por %p122, %p123
      %p125 = scmp.ne.s32.totalorder %s114, %s117
      %p126 = scmp.eq.s32.totalorder %s15, 1
      %p127 = por %p125, %p126
      %p128 = scmp.ne.s32.totalorder %s117, %s118
      %p129 = scmp.eq.s32.totalorder %s15, 0
      %p130 = por %p128, %p129
      %p131 = scmp.ne.s32.totalorder %s117, %s118
      %p132 = scmp.eq.s32.totalorder %s16, 1
      %p133 = por %p131, %p132
      %p135 = scmp.ne.s32.totalorder %s118, %s134
      %p136 = scmp.eq.s32.totalorder %s16, 0
      %p137 = por %p135, %p136
      %p138 = scmp.le.s32.totalorder 1, %s10
      %p139 = scmp.lt.s32.totalorder %s10, 3
      %p140 = pnand %p138, %p139
      %p141 = pneg %p140
      // Predicated region
      $region9: #{_lambda_.5} parent=5 // pred_check
        _
      $region10: #{_lambda_.5} parent=5 // pred_check_branch
        %143 = sbr.rel (%p140) target = $region12
      $region11: #{_lambda_.5} parent=5 // pred_region
        %s144 = ssub.s32 %s10, 1
        // Predicated region
        $region13: #{_lambda_.5} parent=11 // pred_check
          %p145 = pneg %p57
        $region14: #{_lambda_.5} parent=11 // pred_check_branch
          %147 = sbr.rel (%p145) target = $region16
        $region15: #{_lambda_.5} parent=11 // pred_region
          _
        $region16: #{_lambda_.5} parent=11 // pred_fallthru
          _
        // Predicated region
        $region17: #{_lambda_.5} parent=11 // pred_check
          %p148 = pneg %p78
        $region18: #{_lambda_.5} parent=11 // pred_check_branch
          %150 = sbr.rel (%p148) target = $region20
        $region19: #{_lambda_.5} parent=11 // pred_region
          _
        $region20: #{_lambda_.5} parent=11 // pred_fallthru
          _
      $region12: #{_lambda_.5} parent=5 // pred_fallthru
        _
      %p151 = scmp.lt.s32.totalorder %s10, 2
      // Predicated region
      $region21: #{_lambda_.5} parent=5 // pred_check
        %p152 = pneg %p151
      $region22: #{_lambda_.5} parent=5 // pred_check_branch
        %154 = sbr.rel (%p152) target = $region24
      $region23: #{_lambda_.5} parent=5 // pred_region
        // Predicated region
        $region25: #{_lambda_.5} parent=23 // pred_check
          %p155 = pneg %p30
        $region26: #{_lambda_.5} parent=23 // pred_check_branch
          %157 = sbr.rel (%p155) target = $region28
        $region27: #{_lambda_.5} parent=23 // pred_region
          %s158 = sand.u32 %s20, 1
          %s159 = sand.u32 %s20, 1
          %s160 = smul.addr %s159, 32
          %s161 = scalar_lea.vmem [#allocation2], %s160
          %s162 = smul.u32 4, %s10
          %s163 = smul.addr %s162, 4
          %s164 = scalar_lea.vmem %s0, %s163
          // Predicated region
          $region29: #{_lambda_.5} parent=27 // pred_check
            _
          $region30: #{_lambda_.5} parent=27 // pred_check_branch
            %166 = sbr.rel (0) target = $region32
          $region31: #{_lambda_.5} parent=27 // pred_region
            // Predicated region
            $region33: #{_lambda_.5} parent=31 // pred_check
              _
            $region34: #{_lambda_.5} parent=31 // pred_check_branch
              %168 = sbr.rel (0) target = $region36
            $region35: #{_lambda_.5} parent=31 // pred_region
              loop: start=0, step=1, limit=1
              $region37: #{_lambda_.5} parent=35 // loop_pre_header
                _
              $region38: #{_lambda_.5} parent=35 // loop_header
                %s170 = sphi 0, %s174
                %p171 = scmp.ge.s32.totalorder %s170, 1
                %s175 = sphi %s164, %s164
                %s176 = sphi %s161, %s161
              $region39: #{_lambda_.5} parent=35 // loop_header_branch
                %173 = sbr.rel (%p171) target = $region43
              $region40: #{_lambda_.5} parent=35 // loop_body
                %v177 = vld [vmem:[%s175] sm:$0xff]
                %178 = vst [vmem:[%s176] sm:$0xff] %v177
                %v179 = vld [vmem:[%s175 + $0x8] sm:$0xff]
                %180 = vst [vmem:[%s176 + $0x8] sm:$0xff] %v179
                %v181 = vld [vmem:[%s175 + $0x20] sm:$0xff]
                %182 = vst [vmem:[%s176 + $0x10] sm:$0xff] %v181
                %v183 = vld [vmem:[%s175 + $0x28] sm:$0xff]
                %184 = vst [vmem:[%s176 + $0x18] sm:$0xff] %v183
              $region41: #{_lambda_.5} parent=35 // loop_footer
                %s174 = sadd.s32 1, %s170
              $region42: #{_lambda_.5} parent=35 // loop_footer_branch
                %169 = sbr.rel target = $region38
              $region43: #{_lambda_.5} parent=35 // loop_exit
                _
            $region36: #{_lambda_.5} parent=31 // pred_fallthru
              _
            // Predicated region
            $region44: #{_lambda_.5} parent=31 // pred_check
              _
            $region45: #{_lambda_.5} parent=31 // pred_check_branch
              %186 = sbr.rel target = $region47
            $region46: #{_lambda_.5} parent=31 // pred_region
              _
            $region47: #{_lambda_.5} parent=31 // pred_fallthru
              _
          $region32: #{_lambda_.5} parent=27 // pred_fallthru
            _
          %187 = vnop
        $region28: #{_lambda_.5} parent=23 // pred_fallthru
          _
        // Predicated region
        $region48: #{_lambda_.5} parent=23 // pred_check
          %p188 = pneg %p98
        $region49: #{_lambda_.5} parent=23 // pred_check_branch
          %190 = sbr.rel (%p188) target = $region51
        $region50: #{_lambda_.5} parent=23 // pred_region
          %s191 = sand.u32 %s88, 1
          %s192 = sand.u32 %s88, 1
          %s193 = smul.addr %s192, 32
          %s194 = scalar_lea.vmem [#allocation3], %s193
          %s195 = smul.u32 4, %s10
          %s196 = smul.addr %s195, 4
          %s197 = scalar_lea.vmem %s3, %s196
          // Predicated region
          $region52: #{_lambda_.5} parent=50 // pred_check
            _
          $region53: #{_lambda_.5} parent=50 // pred_check_branch
            %199 = sbr.rel (0) target = $region55
          $region54: #{_lambda_.5} parent=50 // pred_region
            // Predicated region
            $region56: #{_lambda_.5} parent=54 // pred_check
              _
            $region57: #{_lambda_.5} parent=54 // pred_check_branch
              %201 = sbr.rel (0) target = $region59
            $region58: #{_lambda_.5} parent=54 // pred_region
              loop: start=0, step=1, limit=1
              $region60: #{_lambda_.5} parent=58 // loop_pre_header
                _
              $region61: #{_lambda_.5} parent=58 // loop_header
                %s203 = sphi 0, %s207
                %p204 = scmp.ge.s32.totalorder %s203, 1
                %s208 = sphi %s197, %s197
                %s209 = sphi %s194, %s194
              $region62: #{_lambda_.5} parent=58 // loop_header_branch
                %206 = sbr.rel (%p204) target = $region66
              $region63: #{_lambda_.5} parent=58 // loop_body
                %v210 = vld [vmem:[%s208] sm:$0xff]
                %211 = vst [vmem:[%s209] sm:$0xff] %v210
                %v212 = vld [vmem:[%s208 + $0x8] sm:$0xff]
                %213 = vst [vmem:[%s209 + $0x8] sm:$0xff] %v212
                %v214 = vld [vmem:[%s208 + $0x20] sm:$0xff]
                %215 = vst [vmem:[%s209 + $0x10] sm:$0xff] %v214
                %v216 = vld [vmem:[%s208 + $0x28] sm:$0xff]
                %217 = vst [vmem:[%s209 + $0x18] sm:$0xff] %v216
              $region64: #{_lambda_.5} parent=58 // loop_footer
                %s207 = sadd.s32 1, %s203
              $region65: #{_lambda_.5} parent=58 // loop_footer_branch
                %202 = sbr.rel target = $region61
              $region66: #{_lambda_.5} parent=58 // loop_exit
                _
            $region59: #{_lambda_.5} parent=54 // pred_fallthru
              _
            // Predicated region
            $region67: #{_lambda_.5} parent=54 // pred_check
              _
            $region68: #{_lambda_.5} parent=54 // pred_check_branch
              %219 = sbr.rel target = $region70
            $region69: #{_lambda_.5} parent=54 // pred_region
              _
            $region70: #{_lambda_.5} parent=54 // pred_fallthru
              _
          $region55: #{_lambda_.5} parent=50 // pred_fallthru
            _
          %220 = vnop
        $region51: #{_lambda_.5} parent=23 // pred_fallthru
          _
      $region24: #{_lambda_.5} parent=5 // pred_fallthru
        _
      %p221 = scmp.le.s32.totalorder 1, %s10
      %p222 = scmp.lt.s32.totalorder %s10, 3
      %p223 = pnand %p221, %p222
      %p224 = pneg %p223
      // Predicated region
      $region71: #{_lambda_.5} parent=5 // pred_check
        _
      $region72: #{_lambda_.5} parent=5 // pred_check_branch
        %226 = sbr.rel (%p223) target = $region74
      $region73: #{_lambda_.5} parent=5 // pred_region
        %s227 = ssub.s32 %s10, 1
        %s228 = sand.u32 %s23, 1
        %s229 = sand.u32 %s23, 1
        %s230 = smul.addr %s229, 32
        %s231 = scalar_lea.vmem [#allocation2], %s230
        // Predicated region
        $region75: #{_lambda_.5} parent=73 // pred_check
          %p232 = pneg %p36
        $region76: #{_lambda_.5} parent=73 // pred_check_branch
          %234 = sbr.rel (%p232) target = $region78
        $region77: #{_lambda_.5} parent=73 // pred_region
          _
        $region78: #{_lambda_.5} parent=73 // pred_fallthru
          _
        %s235 = sand.u32 %s91, 1
        %s236 = sand.u32 %s91, 1
        %s237 = smul.addr %s236, 32
        %s238 = scalar_lea.vmem [#allocation3], %s237
        // Predicated region
        $region79: #{_lambda_.5} parent=73 // pred_check
          %p239 = pneg %p104
        $region80: #{_lambda_.5} parent=73 // pred_check_branch
          %241 = sbr.rel (%p239) target = $region82
        $region81: #{_lambda_.5} parent=73 // pred_region
          _
        $region82: #{_lambda_.5} parent=73 // pred_fallthru
          _
        %s242 = sand.u32 %s23, 1
        %s243 = sand.u32 %s23, 1
        %s244 = smul.addr %s243, 32
        %s245 = scalar_lea.vmem [#allocation2], %s244
        %p246 = pneg %p36
        %p247 = pneg %p33
        %p248 = pneg %p57
        %p249 = pneg %p54
        %p250 = pneg %p78
        %p251 = pneg %p75
        %s252 = sand.u32 %s91, 1
        %s253 = sand.u32 %s91, 1
        %s254 = smul.addr %s253, 32
        %s255 = scalar_lea.vmem [#allocation3], %s254
        %p256 = pneg %p104
        %p257 = pneg %p101
        %p258 = pneg %p130
        %p259 = pneg %p127
        %s260 = sand.u32 %s117, 1
        %s261 = sand.u32 %s117, 1
        %s262 = smul.addr %s261, 64
        %s263 = scalar_lea.vmem [#allocation4], %s262
        %s264 = smul.u32 4, %s15
        %s265 = smul.u32 4, %s15
        %s266 = smul.u32 4, %s15
        %v268 = vld [vmem:[%s1] sm:$0xf]
        %v269 = vld [vmem:[%s1 + $0x4] sm:$0xf]
        %v270 = vld [vmem:[%s231] sm:$0xff]
        %v271 = vld [vmem:[%s231 + $0x8] sm:$0xff]
        %v272 = vld [vmem:[%s231 + $0x10] sm:$0xff]
        %v273 = vld [vmem:[%s231 + $0x18] sm:$0xff]
        %v274 = vld [vmem:[%s2] sm:$0xff]
        %v275 = vld [vmem:[%s2 + $0x8] sm:$0xff]
        %277 = vset.pattern.permute.xlu0 0
        %278 = vperm.xlu0 %277, %v274
        %v279 = vpop.permute.xlu0 %278
        %282 = vset.pattern.permute.xlu0 0
        %283 = vperm.xlu0 %282, %v275
        %v284 = vpop.permute.xlu0 %283
        %v288 = vunpack.c.l.b16 %v268
        %v289 = vunpack.c.l.b16 %v269
        %v290 = vpack.c.b16 %v289, %v288
        %v295 = vunpack.c.l.b16 %v270
        %v296 = vunpack.c.h.b16 %v270
        %v297 = vunpack.c.l.b16 %v271
        %v298 = vunpack.c.h.b16 %v271
        %v299 = vunpack.c.l.b16 %v272
        %v300 = vunpack.c.h.b16 %v272
        %v301 = vunpack.c.l.b16 %v273
        %v302 = vunpack.c.h.b16 %v273
        %v303 = vpack.c.b16 %v299, %v295
        %v304 = vpack.c.b16 %v300, %v296
        %v305 = vpack.c.b16 %v301, %v297
        %v306 = vpack.c.b16 %v302, %v298
        %vm311 = vcmask 130048
        %v313 = vsel %vm311, %v290, 0
        %315 = vmatprep.subr.bf16.mxu0 %v304
        %316 = vmatpush1.bf16.msra.mxu0 %v303
        %317 = vmatprep.subr.bf16.mxu0 0
        %318 = vmatpush1.bf16.msra.mxu0 0
        %319 = vmatprep.subr.bf16.mxu0 0
        %320 = vmatpush1.bf16.msra.mxu0 0
        %321 = vmatprep.subr.bf16.mxu0 0
        %322 = vmatpush1.bf16.msra.mxu0 0
        %323 = vmatprep.subr.bf16.mxu0 0
        %324 = vmatpush1.bf16.msra.mxu0 0
        %325 = vmatprep.subr.bf16.mxu0 0
        %326 = vmatpush1.bf16.msra.mxu0 0
        %327 = vmatprep.subr.bf16.mxu0 0
        %328 = vmatpush1.bf16.msra.mxu0 0
        %329 = vmatprep.subr.bf16.mxu0 0
        %330 = vmatpush1.bf16.msra.mxu0 0
        %331 = vmatprep.subr.bf16.mxu0 0
        %332 = vmatpush1.bf16.msra.mxu0 0
        %333 = vmatprep.subr.bf16.mxu0 0
        %334 = vmatpush1.bf16.msra.mxu0 0
        %335 = vmatprep.subr.bf16.mxu0 0
        %336 = vmatpush1.bf16.msra.mxu0 0
        %337 = vmatprep.subr.bf16.mxu0 0
        %338 = vmatpush1.bf16.msra.mxu0 0
        %339 = vmatprep.subr.bf16.mxu0 0
        %340 = vmatpush1.bf16.msra.mxu0 0
        %341 = vmatprep.subr.bf16.mxu0 0
        %342 = vmatpush1.bf16.msra.mxu0 0
        %343 = vmatprep.subr.bf16.mxu0 0
        %344 = vmatpush1.bf16.msra.mxu0 0
        %345 = vmatprep.subr.bf16.mxu0 0
        %346 = vmatpush1.bf16.msra.mxu0 0
        %347 = vmatprep.mubr.bf16.mxu0 0
        %348 = vmatmul.mubr.bf16.gmra.mrb[0].mxu0 %v313
        %v349 = vpop.f32.mrb[0].mxu0
        %v350 = vadd.f32 %v279, %v349
        %v351 = vpop.f32.mrb[0].mxu0
        %v352 = vadd.f32 %v279, %v351
        %v353 = vpop.f32.mrb[0].mxu0
        %v354 = vadd.f32 %v284, %v353
        %v355 = vpop.f32.mrb[0].mxu0
        %v356 = vadd.f32 %v284, %v355
        %357 = vdwg.mxu0
        %358 = vmatprep.subr.bf16.mxu0 %v306
        %359 = vmatpush1.bf16.msra.mxu0 %v305
        %360 = vmatprep.subr.bf16.mxu0 0
        %361 = vmatpush1.bf16.msra.mxu0 0
        %362 = vmatprep.subr.bf16.mxu0 0
        %363 = vmatpush1.bf16.msra.mxu0 0
        %364 = vmatprep.subr.bf16.mxu0 0
        %365 = vmatpush1.bf16.msra.mxu0 0
        %366 = vmatprep.subr.bf16.mxu0 0
        %367 = vmatpush1.bf16.msra.mxu0 0
        %368 = vmatprep.subr.bf16.mxu0 0
        %369 = vmatpush1.bf16.msra.mxu0 0
        %370 = vmatprep.subr.bf16.mxu0 0
        %371 = vmatpush1.bf16.msra.mxu0 0
        %372 = vmatprep.subr.bf16.mxu0 0
        %373 = vmatpush1.bf16.msra.mxu0 0
        %374 = vmatprep.subr.bf16.mxu0 0
        %375 = vmatpush1.bf16.msra.mxu0 0
        %376 = vmatprep.subr.bf16.mxu0 0
        %377 = vmatpush1.bf16.msra.mxu0 0
        %378 = vmatprep.subr.bf16.mxu0 0
        %379 = vmatpush1.bf16.msra.mxu0 0
        %380 = vmatprep.subr.bf16.mxu0 0
        %381 = vmatpush1.bf16.msra.mxu0 0
        %382 = vmatprep.subr.bf16.mxu0 0
        %383 = vmatpush1.bf16.msra.mxu0 0
        %384 = vmatprep.subr.bf16.mxu0 0
        %385 = vmatpush1.bf16.msra.mxu0 0
        %386 = vmatprep.subr.bf16.mxu0 0
        %387 = vmatpush1.bf16.msra.mxu0 0
        %388 = vmatprep.subr.bf16.mxu0 0
        %389 = vmatpush1.bf16.msra.mxu0 0
        %390 = vmatprep.mubr.bf16.mxu0 0
        %391 = vmatmul.mubr.bf16.gmra.mrb[0].mxu0 %v313
        %v392 = vpop.f32.mrb[0].mxu0
        %v393 = vadd.f32 %v279, %v392
        %v394 = vpop.f32.mrb[0].mxu0
        %v395 = vadd.f32 %v279, %v394
        %v396 = vpop.f32.mrb[0].mxu0
        %v397 = vadd.f32 %v284, %v396
        %v398 = vpop.f32.mrb[0].mxu0
        %v399 = vadd.f32 %v284, %v398
        %400 = vdwg.mxu0
        %v401 = vld [vmem:[%s238] sm:$0xff]
        %v402 = vld [vmem:[%s238 + $0x8] sm:$0xff]
        %v403 = vld [vmem:[%s238 + $0x10] sm:$0xff]
        %v404 = vld [vmem:[%s238 + $0x18] sm:$0xff]
        %v405 = vunpack.c.l.bf16 %v401
        %v406 = vunpack.c.h.bf16 %v401
        %v407 = vunpack.c.l.bf16 %v402
        %v408 = vunpack.c.h.bf16 %v402
        %v409 = vunpack.c.l.bf16 %v403
        %v410 = vunpack.c.h.bf16 %v403
        %v411 = vunpack.c.l.bf16 %v404
        %v412 = vunpack.c.h.bf16 %v404
        %v413 = vadd.f32 %v350, %v405
        %v414 = vadd.f32 %v352, %v406
        %v415 = vadd.f32 %v393, %v407
        %v416 = vadd.f32 %v395, %v408
        %v417 = vadd.f32 %v354, %v409
        %v418 = vadd.f32 %v356, %v410
        %v419 = vadd.f32 %v397, %v411
        %v420 = vadd.f32 %v399, %v412
        %v421 = vmax.f32 %v413, 0.0
        %v422 = vmax.f32 %v414, 0.0
        %v423 = vmax.f32 %v415, 0.0
        %v424 = vmax.f32 %v416, 0.0
        %v425 = vmax.f32 %v417, 0.0
        %v426 = vmax.f32 %v418, 0.0
        %v427 = vmax.f32 %v419, 0.0
        %v428 = vmax.f32 %v420, 0.0
        %429 = vst [vmem:[%s263] sm:$0xff] %v421
        %430 = vst [vmem:[%s263 + $0x8] sm:$0xff] %v422
        %431 = vst [vmem:[%s263 + $0x10] sm:$0xff] %v423
        %432 = vst [vmem:[%s263 + $0x18] sm:$0xff] %v424
        %433 = vst [vmem:[%s263 + $0x20] sm:$0xff] %v425
        %434 = vst [vmem:[%s263 + $0x28] sm:$0xff] %v426
        %435 = vst [vmem:[%s263 + $0x30] sm:$0xff] %v427
        %436 = vst [vmem:[%s263 + $0x38] sm:$0xff] %v428
        %s437 = sand.u32 %s117, 1
        %s438 = sand.u32 %s117, 1
        %s439 = smul.addr %s438, 64
        %s440 = scalar_lea.vmem [#allocation4], %s439
        // Predicated region
        $region83: #{_lambda_.5} parent=73 // pred_check
          %p441 = pneg %p127
        $region84: #{_lambda_.5} parent=73 // pred_check_branch
          %443 = sbr.rel (%p441) target = $region86
        $region85: #{_lambda_.5} parent=73 // pred_region
          %s444 = smul.u32 4, %s15
          %s445 = smul.addr %s444, 8
          %s446 = scalar_lea.vmem %s4, %s445
          // Predicated region
          $region87: #{_lambda_.5} parent=85 // pred_check
            _
          $region88: #{_lambda_.5} parent=85 // pred_check_branch
            %448 = sbr.rel (0) target = $region90
          $region89: #{_lambda_.5} parent=85 // pred_region
            // Predicated region
            $region91: #{_lambda_.5} parent=89 // pred_check
              _
            $region92: #{_lambda_.5} parent=89 // pred_check_branch
              %450 = sbr.rel (0) target = $region94
            $region93: #{_lambda_.5} parent=89 // pred_region
              loop: start=0, step=1, limit=1
              $region95: #{_lambda_.5} parent=93 // loop_pre_header
                _
              $region96: #{_lambda_.5} parent=93 // loop_header
                %s452 = sphi 0, %s456
                %p453 = scmp.ge.s32.totalorder %s452, 1
                %s457 = sphi %s440, %s440
                %s458 = sphi %s446, %s446
              $region97: #{_lambda_.5} parent=93 // loop_header_branch
                %455 = sbr.rel (%p453) target = $region101
              $region98: #{_lambda_.5} parent=93 // loop_body
                %v459 = vld [vmem:[%s457] sm:$0xff]
                %460 = vst [vmem:[%s458] sm:$0xff] %v459
                %v461 = vld [vmem:[%s457 + $0x8] sm:$0xff]
                %462 = vst [vmem:[%s458 + $0x8] sm:$0xff] %v461
                %v463 = vld [vmem:[%s457 + $0x10] sm:$0xff]
                %464 = vst [vmem:[%s458 + $0x10] sm:$0xff] %v463
                %v465 = vld [vmem:[%s457 + $0x18] sm:$0xff]
                %466 = vst [vmem:[%s458 + $0x18] sm:$0xff] %v465
                %v467 = vld [vmem:[%s457 + $0x20] sm:$0xff]
                %468 = vst [vmem:[%s458 + $0x40] sm:$0xff] %v467
                %v469 = vld [vmem:[%s457 + $0x28] sm:$0xff]
                %470 = vst [vmem:[%s458 + $0x48] sm:$0xff] %v469
                %v471 = vld [vmem:[%s457 + $0x30] sm:$0xff]
                %472 = vst [vmem:[%s458 + $0x50] sm:$0xff] %v471
                %v473 = vld [vmem:[%s457 + $0x38] sm:$0xff]
                %474 = vst [vmem:[%s458 + $0x58] sm:$0xff] %v473
              $region99: #{_lambda_.5} parent=93 // loop_footer
                %s456 = sadd.s32 1, %s452
              $region100: #{_lambda_.5} parent=93 // loop_footer_branch
                %451 = sbr.rel target = $region96
              $region101: #{_lambda_.5} parent=93 // loop_exit
                _
            $region94: #{_lambda_.5} parent=89 // pred_fallthru
              _
            // Predicated region
            $region102: #{_lambda_.5} parent=89 // pred_check
              _
            $region103: #{_lambda_.5} parent=89 // pred_check_branch
              %476 = sbr.rel target = $region105
            $region104: #{_lambda_.5} parent=89 // pred_region
              _
            $region105: #{_lambda_.5} parent=89 // pred_fallthru
              _
          $region90: #{_lambda_.5} parent=85 // pred_fallthru
            _
          %477 = vnop
        $region86: #{_lambda_.5} parent=73 // pred_fallthru
          _
      $region74: #{_lambda_.5} parent=5 // pred_fallthru
        _
      %p478 = scmp.le.s32.totalorder 2, %s10
      // Predicated region
      $region106: #{_lambda_.5} parent=5 // pred_check
        %p479 = pneg %p478
      $region107: #{_lambda_.5} parent=5 // pred_check_branch
        %481 = sbr.rel (%p479) target = $region109
      $region108: #{_lambda_.5} parent=5 // pred_region
        %s482 = ssub.s32 %s10, 2
        // Predicated region
        $region110: #{_lambda_.5} parent=108 // pred_check
          %p483 = pneg %p133
        $region111: #{_lambda_.5} parent=108 // pred_check_branch
          %485 = sbr.rel (%p483) target = $region113
        $region112: #{_lambda_.5} parent=108 // pred_region
          %s486 = sand.u32 %s118, 1
          %s487 = sand.u32 %s118, 1
          %s488 = smul.addr %s487, 64
          %s489 = scalar_lea.vmem [#allocation4], %s488
        $region113: #{_lambda_.5} parent=108 // pred_fallthru
          _
      $region109: #{_lambda_.5} parent=5 // pred_fallthru
        _
    $region6: #{_lambda_.5} parent=1 // loop_footer
      %s14 = sadd.s32 1, %s10
    $region7: #{_lambda_.5} parent=1 // loop_footer_branch
      %9 = sbr.rel target = $region3
    $region8: #{_lambda_.5} parent=1 // loop_exit
      _

// kernel: _lambda_.6
$region0: #{_lambda_.6}
  #allocation0 [shape = 'u32[]', space=smem, size = 0x4, offset = 0x4, fixed_abs, tag = 'smem constant byte address 0x4 - core index']
  #allocation1 [shape = 'u32[144,128]{1,0:T(1,128)}', space=vmem, size = 0x12000, scoped, tag = 'internal scratch']
  %s0 = inlined_call_operand.vmem [shape: bf16[16,1024], index: 0, kind: input, shape index: {}]
  %s1 = inlined_call_operand.vmem [shape: bf16[16,16], index: 1, kind: input, shape index: {}]
  %s2 = inlined_call_operand.vmem [shape: f32[16,1], index: 2, kind: input, shape index: {}]
  %s3 = inlined_call_operand.vmem [shape: bf16[16,1024], index: 3, kind: input, shape index: {}]
  %s4 = inlined_call_operand.vmem [shape: f32[16,1024], index: 4, kind: output, shape index: {}]
  %s5 = sld [smem:[#allocation0]]
  $region114: #{_lambda_.6} parent=0
    _
  %s7 = ssub.s32 1, %s5
  %s8 = scalar_select 0, %s7, %s5
  $region1: #{_lambda_.6} parent=0
    #allocation2 [shape = 'u8[32768]{0}', space=vmem, size = 0x8000, scoped, tag = 'input window, operand 0']
    #allocation3 [shape = 'u8[32768]{0}', space=vmem, size = 0x8000, scoped, tag = 'input window, operand 3']
    #allocation4 [shape = 'u8[65536]{0}', space=vmem, size = 0x10000, scoped, tag = 'output window, operand 0']
    loop: start=0, step=1, limit=4
    $region2: #{_lambda_.6} parent=1 // loop_pre_header
      _
    $region3: #{_lambda_.6} parent=1 // loop_header
      %s10 = sphi 0, %s14
      %p11 = scmp.ge.s32.totalorder %s10, 4
      %s20 = sphi 0, %s22
      %s23 = sphi 0, %s20
      %s24 = sphi 0, %s23
      %s40 = sphi 0, %s24
      %s44 = sphi 0, %s44
      %s46 = sphi 0, %s44
      %s47 = sphi 0, %s46
      %s61 = sphi 0, %s47
      %s65 = sphi 0, %s65
      %s67 = sphi 0, %s65
      %s68 = sphi 0, %s67
      %s82 = sphi 0, %s68
      %s88 = sphi 0, %s90
      %s91 = sphi 0, %s88
      %s92 = sphi 0, %s91
      %s108 = sphi 0, %s92
      %s114 = sphi 0, %s116
      %s117 = sphi 0, %s114
      %s118 = sphi 0, %s117
      %s134 = sphi 0, %s118
    $region4: #{_lambda_.6} parent=1 // loop_header_branch
      %13 = sbr.rel (%p11) target = $region8
    $region5: #{_lambda_.6} parent=1 // loop_body
      %s15 = ssub.s32 %s10, 1
      %s16 = ssub.s32 %s10, 2
      %s17 = sadd.s32 %s10, 1
      %s18 = ssub.s32 %s10, %s17
      %p19 = scmp.eq.s32.totalorder %s18, 0
      %s21 = sadd.s32 %s20, 1
      %s22 = scalar_select %p19, %s20, %s21
      %p25 = pneg %p19
      %p26 = scmp.eq.s32.totalorder %s10, 1
      %p27 = por %p25, %p26
      %p28 = scmp.ne.s32.totalorder %s20, %s23
      %p29 = scmp.eq.s32.totalorder %s10, 0
      %p30 = por %p28, %p29
      %p31 = scmp.ne.s32.totalorder %s20, %s23
      %p32 = scmp.eq.s32.totalorder %s15, 1
      %p33 = por %p31, %p32
      %p34 = scmp.ne.s32.totalorder %s23, %s24
      %p35 = scmp.eq.s32.totalorder %s15, 0
      %p36 = por %p34, %p35
      %p37 = scmp.ne.s32.totalorder %s23, %s24
      %p38 = scmp.eq.s32.totalorder %s16, 1
      %p39 = por %p37, %p38
      %p41 = scmp.ne.s32.totalorder %s24, %s40
      %p42 = scmp.eq.s32.totalorder %s16, 0
      %p43 = por %p41, %p42
      %s45 = sadd.s32 %s44, 1
      %p48 = scmp.eq.s32.totalorder %s10, 1
      %p49 = scmp.ne.s32.totalorder %s44, %s46
      %p50 = scmp.eq.s32.totalorder %s10, 0
      %p51 = por %p49, %p50
      %p52 = scmp.ne.s32.totalorder %s44, %s46
      %p53 = scmp.eq.s32.totalorder %s15, 1
      %p54 = por %p52, %p53
      %p55 = scmp.ne.s32.totalorder %s46, %s47
      %p56 = scmp.eq.s32.totalorder %s15, 0
      %p57 = por %p55, %p56
      %p58 = scmp.ne.s32.totalorder %s46, %s47
      %p59 = scmp.eq.s32.totalorder %s16, 1
      %p60 = por %p58, %p59
      %p62 = scmp.ne.s32.totalorder %s47, %s61
      %p63 = scmp.eq.s32.totalorder %s16, 0
      %p64 = por %p62, %p63
      %s66 = sadd.s32 %s65, 1
      %p69 = scmp.eq.s32.totalorder %s10, 1
      %p70 = scmp.ne.s32.totalorder %s65, %s67
      %p71 = scmp.eq.s32.totalorder %s10, 0
      %p72 = por %p70, %p71
      %p73 = scmp.ne.s32.totalorder %s65, %s67
      %p74 = scmp.eq.s32.totalorder %s15, 1
      %p75 = por %p73, %p74
      %p76 = scmp.ne.s32.totalorder %s67, %s68
      %p77 = scmp.eq.s32.totalorder %s15, 0
      %p78 = por %p76, %p77
      %p79 = scmp.ne.s32.totalorder %s67, %s68
      %p80 = scmp.eq.s32.totalorder %s16, 1
      %p81 = por %p79, %p80
      %p83 = scmp.ne.s32.totalorder %s68, %s82
      %p84 = scmp.eq.s32.totalorder %s16, 0
      %p85 = por %p83, %p84
      %s86 = ssub.s32 %s10, %s17
      %p87 = scmp.eq.s32.totalorder %s86, 0
      %s89 = sadd.s32 %s88, 1
      %s90 = scalar_select %p87, %s88, %s89
      %p93 = pneg %p87
      %p94 = scmp.eq.s32.totalorder %s10, 1
      %p95 = por %p93, %p94
      %p96 = scmp.ne.s32.totalorder %s88, %s91
      %p97 = scmp.eq.s32.totalorder %s10, 0
      %p98 = por %p96, %p97
      %p99 = scmp.ne.s32.totalorder %s88, %s91
      %p100 = scmp.eq.s32.totalorder %s15, 1
      %p101 = por %p99, %p100
      %p102 = scmp.ne.s32.totalorder %s91, %s92
      %p103 = scmp.eq.s32.totalorder %s15, 0
      %p104 = por %p102, %p103
      %p105 = scmp.ne.s32.totalorder %s91, %s92
      %p106 = scmp.eq.s32.totalorder %s16, 1
      %p107 = por %p105, %p106
      %p109 = scmp.ne.s32.totalorder %s92, %s108
      %p110 = scmp.eq.s32.totalorder %s16, 0
      %p111 = por %p109, %p110
      %s112 = ssub.s32 %s10, %s17
      %p113 = scmp.eq.s32.totalorder %s112, 0
      %s115 = sadd.s32 %s114, 1
      %s116 = scalar_select %p113, %s114, %s115
      %p119 = pneg %p113
      %p120 = scmp.eq.s32.totalorder %s10, 1
      %p121 = por %p119, %p120
      %p122 = scmp.ne.s32.totalorder %s114, %s117
      %p123 = scmp.eq.s32.totalorder %s10, 0
      %p124 = por %p122, %p123
      %p125 = scmp.ne.s32.totalorder %s114, %s117
      %p126 = scmp.eq.s32.totalorder %s15, 1
      %p127 = por %p125, %p126
      %p128 = scmp.ne.s32.totalorder %s117, %s118
      %p129 = scmp.eq.s32.totalorder %s15, 0
      %p130 = por %p128, %p129
      %p131 = scmp.ne.s32.totalorder %s117, %s118
      %p132 = scmp.eq.s32.totalorder %s16, 1
      %p133 = por %p131, %p132
      %p135 = scmp.ne.s32.totalorder %s118, %s134
      %p136 = scmp.eq.s32.totalorder %s16, 0
      %p137 = por %p135, %p136
      %p138 = scmp.le.s32.totalorder 1, %s10
      %p139 = scmp.lt.s32.totalorder %s10, 3
      %p140 = pnand %p138, %p139
      %p141 = pneg %p140
      // Predicated region
      $region9: #{_lambda_.6} parent=5 // pred_check
        _
      $region10: #{_lambda_.6} parent=5 // pred_check_branch
        %143 = sbr.rel (%p140) target = $region12
      $region11: #{_lambda_.6} parent=5 // pred_region
        %s144 = ssub.s32 %s10, 1
        // Predicated region
        $region13: #{_lambda_.6} parent=11 // pred_check
          %p145 = pneg %p57
        $region14: #{_lambda_.6} parent=11 // pred_check_branch
          %147 = sbr.rel (%p145) target = $region16
        $region15: #{_lambda_.6} parent=11 // pred_region
          _
        $region16: #{_lambda_.6} parent=11 // pred_fallthru
          _
        // Predicated region
        $region17: #{_lambda_.6} parent=11 // pred_check
          %p148 = pneg %p78
        $region18: #{_lambda_.6} parent=11 // pred_check_branch
          %150 = sbr.rel (%p148) target = $region20
        $region19: #{_lambda_.6} parent=11 // pred_region
          _
        $region20: #{_lambda_.6} parent=11 // pred_fallthru
          _
      $region12: #{_lambda_.6} parent=5 // pred_fallthru
        _
      %p151 = scmp.lt.s32.totalorder %s10, 2
      // Predicated region
      $region21: #{_lambda_.6} parent=5 // pred_check
        %p152 = pneg %p151
      $region22: #{_lambda_.6} parent=5 // pred_check_branch
        %154 = sbr.rel (%p152) target = $region24
      $region23: #{_lambda_.6} parent=5 // pred_region
        // Predicated region
        $region25: #{_lambda_.6} parent=23 // pred_check
          %p155 = pneg %p30
        $region26: #{_lambda_.6} parent=23 // pred_check_branch
          %157 = sbr.rel (%p155) target = $region28
        $region27: #{_lambda_.6} parent=23 // pred_region
          %s158 = sand.u32 %s20, 1
          %s159 = sand.u32 %s20, 1
          %s160 = smul.addr %s159, 32
          %s161 = scalar_lea.vmem [#allocation2], %s160
          %s162 = smul.u32 4, %s10
          %s163 = smul.addr %s162, 4
          %s164 = scalar_lea.vmem %s0, %s163
          // Predicated region
          $region29: #{_lambda_.6} parent=27 // pred_check
            _
          $region30: #{_lambda_.6} parent=27 // pred_check_branch
            %166 = sbr.rel (0) target = $region32
          $region31: #{_lambda_.6} parent=27 // pred_region
            // Predicated region
            $region33: #{_lambda_.6} parent=31 // pred_check
              _
            $region34: #{_lambda_.6} parent=31 // pred_check_branch
              %168 = sbr.rel (0) target = $region36
            $region35: #{_lambda_.6} parent=31 // pred_region
              loop: start=0, step=1, limit=1
              $region37: #{_lambda_.6} parent=35 // loop_pre_header
                _
              $region38: #{_lambda_.6} parent=35 // loop_header
                %s170 = sphi 0, %s174
                %p171 = scmp.ge.s32.totalorder %s170, 1
                %s175 = sphi %s164, %s164
                %s176 = sphi %s161, %s161
              $region39: #{_lambda_.6} parent=35 // loop_header_branch
                %173 = sbr.rel (%p171) target = $region43
              $region40: #{_lambda_.6} parent=35 // loop_body
                %v177 = vld [vmem:[%s175] sm:$0xff]
                %178 = vst [vmem:[%s176] sm:$0xff] %v177
                %v179 = vld [vmem:[%s175 + $0x8] sm:$0xff]
                %180 = vst [vmem:[%s176 + $0x8] sm:$0xff] %v179
                %v181 = vld [vmem:[%s175 + $0x20] sm:$0xff]
                %182 = vst [vmem:[%s176 + $0x10] sm:$0xff] %v181
                %v183 = vld [vmem:[%s175 + $0x28] sm:$0xff]
                %184 = vst [vmem:[%s176 + $0x18] sm:$0xff] %v183
              $region41: #{_lambda_.6} parent=35 // loop_footer
                %s174 = sadd.s32 1, %s170
              $region42: #{_lambda_.6} parent=35 // loop_footer_branch
                %169 = sbr.rel target = $region38
              $region43: #{_lambda_.6} parent=35 // loop_exit
                _
            $region36: #{_lambda_.6} parent=31 // pred_fallthru
              _
            // Predicated region
            $region44: #{_lambda_.6} parent=31 // pred_check
              _
            $region45: #{_lambda_.6} parent=31 // pred_check_branch
              %186 = sbr.rel target = $region47
            $region46: #{_lambda_.6} parent=31 // pred_region
              _
            $region47: #{_lambda_.6} parent=31 // pred_fallthru
              _
          $region32: #{_lambda_.6} parent=27 // pred_fallthru
            _
          %187 = vnop
        $region28: #{_lambda_.6} parent=23 // pred_fallthru
          _
        // Predicated region
        $region48: #{_lambda_.6} parent=23 // pred_check
          %p188 = pneg %p98
        $region49: #{_lambda_.6} parent=23 // pred_check_branch
          %190 = sbr.rel (%p188) target = $region51
        $region50: #{_lambda_.6} parent=23 // pred_region
          %s191 = sand.u32 %s88, 1
          %s192 = sand.u32 %s88, 1
          %s193 = smul.addr %s192, 32
          %s194 = scalar_lea.vmem [#allocation3], %s193
          %s195 = smul.u32 4, %s10
          %s196 = smul.addr %s195, 4
          %s197 = scalar_lea.vmem %s3, %s196
          // Predicated region
          $region52: #{_lambda_.6} parent=50 // pred_check
            _
          $region53: #{_lambda_.6} parent=50 // pred_check_branch
            %199 = sbr.rel (0) target = $region55
          $region54: #{_lambda_.6} parent=50 // pred_region
            // Predicated region
            $region56: #{_lambda_.6} parent=54 // pred_check
              _
            $region57: #{_lambda_.6} parent=54 // pred_check_branch
              %201 = sbr.rel (0) target = $region59
            $region58: #{_lambda_.6} parent=54 // pred_region
              loop: start=0, step=1, limit=1
              $region60: #{_lambda_.6} parent=58 // loop_pre_header
                _
              $region61: #{_lambda_.6} parent=58 // loop_header
                %s203 = sphi 0, %s207
                %p204 = scmp.ge.s32.totalorder %s203, 1
                %s208 = sphi %s197, %s197
                %s209 = sphi %s194, %s194
              $region62: #{_lambda_.6} parent=58 // loop_header_branch
                %206 = sbr.rel (%p204) target = $region66
              $region63: #{_lambda_.6} parent=58 // loop_body
                %v210 = vld [vmem:[%s208] sm:$0xff]
                %211 = vst [vmem:[%s209] sm:$0xff] %v210
                %v212 = vld [vmem:[%s208 + $0x8] sm:$0xff]
                %213 = vst [vmem:[%s209 + $0x8] sm:$0xff] %v212
                %v214 = vld [vmem:[%s208 + $0x20] sm:$0xff]
                %215 = vst [vmem:[%s209 + $0x10] sm:$0xff] %v214
                %v216 = vld [vmem:[%s208 + $0x28] sm:$0xff]
                %217 = vst [vmem:[%s209 + $0x18] sm:$0xff] %v216
              $region64: #{_lambda_.6} parent=58 // loop_footer
                %s207 = sadd.s32 1, %s203
              $region65: #{_lambda_.6} parent=58 // loop_footer_branch
                %202 = sbr.rel target = $region61
              $region66: #{_lambda_.6} parent=58 // loop_exit
                _
            $region59: #{_lambda_.6} parent=54 // pred_fallthru
              _
            // Predicated region
            $region67: #{_lambda_.6} parent=54 // pred_check
              _
            $region68: #{_lambda_.6} parent=54 // pred_check_branch
              %219 = sbr.rel target = $region70
            $region69: #{_lambda_.6} parent=54 // pred_region
              _
            $region70: #{_lambda_.6} parent=54 // pred_fallthru
              _
          $region55: #{_lambda_.6} parent=50 // pred_fallthru
            _
          %220 = vnop
        $region51: #{_lambda_.6} parent=23 // pred_fallthru
          _
      $region24: #{_lambda_.6} parent=5 // pred_fallthru
        _
      %p221 = scmp.le.s32.totalorder 1, %s10
      %p222 = scmp.lt.s32.totalorder %s10, 3
      %p223 = pnand %p221, %p222
      %p224 = pneg %p223
      // Predicated region
      $region71: #{_lambda_.6} parent=5 // pred_check
        _
      $region72: #{_lambda_.6} parent=5 // pred_check_branch
        %226 = sbr.rel (%p223) target = $region74
      $region73: #{_lambda_.6} parent=5 // pred_region
        %s227 = ssub.s32 %s10, 1
        %s228 = sand.u32 %s23, 1
        %s229 = sand.u32 %s23, 1
        %s230 = smul.addr %s229, 32
        %s231 = scalar_lea.vmem [#allocation2], %s230
        // Predicated region
        $region75: #{_lambda_.6} parent=73 // pred_check
          %p232 = pneg %p36
        $region76: #{_lambda_.6} parent=73 // pred_check_branch
          %234 = sbr.rel (%p232) target = $region78
        $region77: #{_lambda_.6} parent=73 // pred_region
          _
        $region78: #{_lambda_.6} parent=73 // pred_fallthru
          _
        %s235 = sand.u32 %s91, 1
        %s236 = sand.u32 %s91, 1
        %s237 = smul.addr %s236, 32
        %s238 = scalar_lea.vmem [#allocation3], %s237
        // Predicated region
        $region79: #{_lambda_.6} parent=73 // pred_check
          %p239 = pneg %p104
        $region80: #{_lambda_.6} parent=73 // pred_check_branch
          %241 = sbr.rel (%p239) target = $region82
        $region81: #{_lambda_.6} parent=73 // pred_region
          _
        $region82: #{_lambda_.6} parent=73 // pred_fallthru
          _
        %s242 = sand.u32 %s23, 1
        %s243 = sand.u32 %s23, 1
        %s244 = smul.addr %s243, 32
        %s245 = scalar_lea.vmem [#allocation2], %s244
        %p246 = pneg %p36
        %p247 = pneg %p33
        %p248 = pneg %p57
        %p249 = pneg %p54
        %p250 = pneg %p78
        %p251 = pneg %p75
        %s252 = sand.u32 %s91, 1
        %s253 = sand.u32 %s91, 1
        %s254 = smul.addr %s253, 32
        %s255 = scalar_lea.vmem [#allocation3], %s254
        %p256 = pneg %p104
        %p257 = pneg %p101
        %p258 = pneg %p130
        %p259 = pneg %p127
        %s260 = sand.u32 %s117, 1
        %s261 = sand.u32 %s117, 1
        %s262 = smul.addr %s261, 64
        %s263 = scalar_lea.vmem [#allocation4], %s262
        %s264 = smul.u32 4, %s15
        %s265 = smul.u32 4, %s15
        %s266 = smul.u32 4, %s15
        %v268 = vld [vmem:[%s1] sm:$0xf]
        %v269 = vld [vmem:[%s1 + $0x4] sm:$0xf]
        %v270 = vld [vmem:[%s231] sm:$0xff]
        %v271 = vld [vmem:[%s231 + $0x8] sm:$0xff]
        %v272 = vld [vmem:[%s231 + $0x10] sm:$0xff]
        %v273 = vld [vmem:[%s231 + $0x18] sm:$0xff]
        %v274 = vld [vmem:[%s2] sm:$0xff]
        %v275 = vld [vmem:[%s2 + $0x8] sm:$0xff]
        %277 = vset.pattern.permute.xlu0 0
        %278 = vperm.xlu0 %277, %v274
        %v279 = vpop.permute.xlu0 %278
        %282 = vset.pattern.permute.xlu0 0
        %283 = vperm.xlu0 %282, %v275
        %v284 = vpop.permute.xlu0 %283
        %v288 = vunpack.c.l.b16 %v268
        %v289 = vunpack.c.l.b16 %v269
        %v290 = vpack.c.b16 %v289, %v288
        %v295 = vunpack.c.l.b16 %v270
        %v296 = vunpack.c.h.b16 %v270
        %v297 = vunpack.c.l.b16 %v271
        %v298 = vunpack.c.h.b16 %v271
        %v299 = vunpack.c.l.b16 %v272
        %v300 = vunpack.c.h.b16 %v272
        %v301 = vunpack.c.l.b16 %v273
        %v302 = vunpack.c.h.b16 %v273
        %v303 = vpack.c.b16 %v299, %v295
        %v304 = vpack.c.b16 %v300, %v296
        %v305 = vpack.c.b16 %v301, %v297
        %v306 = vpack.c.b16 %v302, %v298
        %vm311 = vcmask 130048
        %v313 = vsel %vm311, %v290, 0
        %315 = vmatprep.subr.bf16.mxu0 %v304
        %316 = vmatpush1.bf16.msra.mxu0 %v303
        %317 = vmatprep.subr.bf16.mxu0 0
        %318 = vmatpush1.bf16.msra.mxu0 0
        %319 = vmatprep.subr.bf16.mxu0 0
        %320 = vmatpush1.bf16.msra.mxu0 0
        %321 = vmatprep.subr.bf16.mxu0 0
        %322 = vmatpush1.bf16.msra.mxu0 0
        %323 = vmatprep.subr.bf16.mxu0 0
        %324 = vmatpush1.bf16.msra.mxu0 0
        %325 = vmatprep.subr.bf16.mxu0 0
        %326 = vmatpush1.bf16.msra.mxu0 0
        %327 = vmatprep.subr.bf16.mxu0 0
        %328 = vmatpush1.bf16.msra.mxu0 0
        %329 = vmatprep.subr.bf16.mxu0 0
        %330 = vmatpush1.bf16.msra.mxu0 0
        %331 = vmatprep.subr.bf16.mxu0 0
        %332 = vmatpush1.bf16.msra.mxu0 0
        %333 = vmatprep.subr.bf16.mxu0 0
        %334 = vmatpush1.bf16.msra.mxu0 0
        %335 = vmatprep.subr.bf16.mxu0 0
        %336 = vmatpush1.bf16.msra.mxu0 0
        %337 = vmatprep.subr.bf16.mxu0 0
        %338 = vmatpush1.bf16.msra.mxu0 0
        %339 = vmatprep.subr.bf16.mxu0 0
        %340 = vmatpush1.bf16.msra.mxu0 0
        %341 = vmatprep.subr.bf16.mxu0 0
        %342 = vmatpush1.bf16.msra.mxu0 0
        %343 = vmatprep.subr.bf16.mxu0 0
        %344 = vmatpush1.bf16.msra.mxu0 0
        %345 = vmatprep.subr.bf16.mxu0 0
        %346 = vmatpush1.bf16.msra.mxu0 0
        %347 = vmatprep.mubr.bf16.mxu0 0
        %348 = vmatmul.mubr.bf16.gmra.mrb[0].mxu0 %v313
        %v349 = vpop.f32.mrb[0].mxu0
        %v350 = vadd.f32 %v279, %v349
        %v351 = vpop.f32.mrb[0].mxu0
        %v352 = vadd.f32 %v279, %v351
        %v353 = vpop.f32.mrb[0].mxu0
        %v354 = vadd.f32 %v284, %v353
        %v355 = vpop.f32.mrb[0].mxu0
        %v356 = vadd.f32 %v284, %v355
        %357 = vdwg.mxu0
        %358 = vmatprep.subr.bf16.mxu0 %v306
        %359 = vmatpush1.bf16.msra.mxu0 %v305
        %360 = vmatprep.subr.bf16.mxu0 0
        %361 = vmatpush1.bf16.msra.mxu0 0
        %362 = vmatprep.subr.bf16.mxu0 0
        %363 = vmatpush1.bf16.msra.mxu0 0
        %364 = vmatprep.subr.bf16.mxu0 0
        %365 = vmatpush1.bf16.msra.mxu0 0
        %366 = vmatprep.subr.bf16.mxu0 0
        %367 = vmatpush1.bf16.msra.mxu0 0
        %368 = vmatprep.subr.bf16.mxu0 0
        %369 = vmatpush1.bf16.msra.mxu0 0
        %370 = vmatprep.subr.bf16.mxu0 0
        %371 = vmatpush1.bf16.msra.mxu0 0
        %372 = vmatprep.subr.bf16.mxu0 0
        %373 = vmatpush1.bf16.msra.mxu0 0
        %374 = vmatprep.subr.bf16.mxu0 0
        %375 = vmatpush1.bf16.msra.mxu0 0
        %376 = vmatprep.subr.bf16.mxu0 0
        %377 = vmatpush1.bf16.msra.mxu0 0
        %378 = vmatprep.subr.bf16.mxu0 0
        %379 = vmatpush1.bf16.msra.mxu0 0
        %380 = vmatprep.subr.bf16.mxu0 0
        %381 = vmatpush1.bf16.msra.mxu0 0
        %382 = vmatprep.subr.bf16.mxu0 0
        %383 = vmatpush1.bf16.msra.mxu0 0
        %384 = vmatprep.subr.bf16.mxu0 0
        %385 = vmatpush1.bf16.msra.mxu0 0
        %386 = vmatprep.subr.bf16.mxu0 0
        %387 = vmatpush1.bf16.msra.mxu0 0
        %388 = vmatprep.subr.bf16.mxu0 0
        %389 = vmatpush1.bf16.msra.mxu0 0
        %390 = vmatprep.mubr.bf16.mxu0 0
        %391 = vmatmul.mubr.bf16.gmra.mrb[0].mxu0 %v313
        %v392 = vpop.f32.mrb[0].mxu0
        %v393 = vadd.f32 %v279, %v392
        %v394 = vpop.f32.mrb[0].mxu0
        %v395 = vadd.f32 %v279, %v394
        %v396 = vpop.f32.mrb[0].mxu0
        %v397 = vadd.f32 %v284, %v396
        %v398 = vpop.f32.mrb[0].mxu0
        %v399 = vadd.f32 %v284, %v398
        %400 = vdwg.mxu0
        %v401 = vld [vmem:[%s238] sm:$0xff]
        %v402 = vld [vmem:[%s238 + $0x8] sm:$0xff]
        %v403 = vld [vmem:[%s238 + $0x10] sm:$0xff]
        %v404 = vld [vmem:[%s238 + $0x18] sm:$0xff]
        %v405 = vunpack.c.l.bf16 %v401
        %v406 = vunpack.c.h.bf16 %v401
        %v407 = vunpack.c.l.bf16 %v402
        %v408 = vunpack.c.h.bf16 %v402
        %v409 = vunpack.c.l.bf16 %v403
        %v410 = vunpack.c.h.bf16 %v403
        %v411 = vunpack.c.l.bf16 %v404
        %v412 = vunpack.c.h.bf16 %v404
        %v413 = vadd.f32 %v350, %v405
        %v414 = vadd.f32 %v352, %v406
        %v415 = vadd.f32 %v393, %v407
        %v416 = vadd.f32 %v395, %v408
        %v417 = vadd.f32 %v354, %v409
        %v418 = vadd.f32 %v356, %v410
        %v419 = vadd.f32 %v397, %v411
        %v420 = vadd.f32 %v399, %v412
        %421 = vst [vmem:[%s263] sm:$0xff] %v413
        %422 = vst [vmem:[%s263 + $0x8] sm:$0xff] %v414
        %423 = vst [vmem:[%s263 + $0x10] sm:$0xff] %v415
        %424 = vst [vmem:[%s263 + $0x18] sm:$0xff] %v416
        %425 = vst [vmem:[%s263 + $0x20] sm:$0xff] %v417
        %426 = vst [vmem:[%s263 + $0x28] sm:$0xff] %v418
        %427 = vst [vmem:[%s263 + $0x30] sm:$0xff] %v419
        %428 = vst [vmem:[%s263 + $0x38] sm:$0xff] %v420
        %s429 = sand.u32 %s117, 1
        %s430 = sand.u32 %s117, 1
        %s431 = smul.addr %s430, 64
        %s432 = scalar_lea.vmem [#allocation4], %s431
        // Predicated region
        $region83: #{_lambda_.6} parent=73 // pred_check
          %p433 = pneg %p127
        $region84: #{_lambda_.6} parent=73 // pred_check_branch
          %435 = sbr.rel (%p433) target = $region86
        $region85: #{_lambda_.6} parent=73 // pred_region
          %s436 = smul.u32 4, %s15
          %s437 = smul.addr %s436, 8
          %s438 = scalar_lea.vmem %s4, %s437
          // Predicated region
          $region87: #{_lambda_.6} parent=85 // pred_check
            _
          $region88: #{_lambda_.6} parent=85 // pred_check_branch
            %440 = sbr.rel (0) target = $region90
          $region89: #{_lambda_.6} parent=85 // pred_region
            // Predicated region
            $region91: #{_lambda_.6} parent=89 // pred_check
              _
            $region92: #{_lambda_.6} parent=89 // pred_check_branch
              %442 = sbr.rel (0) target = $region94
            $region93: #{_lambda_.6} parent=89 // pred_region
              loop: start=0, step=1, limit=1
              $region95: #{_lambda_.6} parent=93 // loop_pre_header
                _
              $region96: #{_lambda_.6} parent=93 // loop_header
                %s444 = sphi 0, %s448
                %p445 = scmp.ge.s32.totalorder %s444, 1
                %s449 = sphi %s432, %s432
                %s450 = sphi %s438, %s438
              $region97: #{_lambda_.6} parent=93 // loop_header_branch
                %447 = sbr.rel (%p445) target = $region101
              $region98: #{_lambda_.6} parent=93 // loop_body
                %v451 = vld [vmem:[%s449] sm:$0xff]
                %452 = vst [vmem:[%s450] sm:$0xff] %v451
                %v453 = vld [vmem:[%s449 + $0x8] sm:$0xff]
                %454 = vst [vmem:[%s450 + $0x8] sm:$0xff] %v453
                %v455 = vld [vmem:[%s449 + $0x10] sm:$0xff]
                %456 = vst [vmem:[%s450 + $0x10] sm:$0xff] %v455
                %v457 = vld [vmem:[%s449 + $0x18] sm:$0xff]
                %458 = vst [vmem:[%s450 + $0x18] sm:$0xff] %v457
                %v459 = vld [vmem:[%s449 + $0x20] sm:$0xff]
                %460 = vst [vmem:[%s450 + $0x40] sm:$0xff] %v459
                %v461 = vld [vmem:[%s449 + $0x28] sm:$0xff]
                %462 = vst [vmem:[%s450 + $0x48] sm:$0xff] %v461
                %v463 = vld [vmem:[%s449 + $0x30] sm:$0xff]
                %464 = vst [vmem:[%s450 + $0x50] sm:$0xff] %v463
                %v465 = vld [vmem:[%s449 + $0x38] sm:$0xff]
                %466 = vst [vmem:[%s450 + $0x58] sm:$0xff] %v465
              $region99: #{_lambda_.6} parent=93 // loop_footer
                %s448 = sadd.s32 1, %s444
              $region100: #{_lambda_.6} parent=93 // loop_footer_branch
                %443 = sbr.rel target = $region96
              $region101: #{_lambda_.6} parent=93 // loop_exit
                _
            $region94: #{_lambda_.6} parent=89 // pred_fallthru
              _
            // Predicated region
            $region102: #{_lambda_.6} parent=89 // pred_check
              _
            $region103: #{_lambda_.6} parent=89 // pred_check_branch
              %468 = sbr.rel target = $region105
            $region104: #{_lambda_.6} parent=89 // pred_region
              _
            $region105: #{_lambda_.6} parent=89 // pred_fallthru
              _
          $region90: #{_lambda_.6} parent=85 // pred_fallthru
            _
          %469 = vnop
        $region86: #{_lambda_.6} parent=73 // pred_fallthru
          _
      $region74: #{_lambda_.6} parent=5 // pred_fallthru
        _
      %p470 = scmp.le.s32.totalorder 2, %s10
      // Predicated region
      $region106: #{_lambda_.6} parent=5 // pred_check
        %p471 = pneg %p470
      $region107: #{_lambda_.6} parent=5 // pred_check_branch
        %473 = sbr.rel (%p471) target = $region109
      $region108: #{_lambda_.6} parent=5 // pred_region
        %s474 = ssub.s32 %s10, 2
        // Predicated region
        $region110: #{_lambda_.6} parent=108 // pred_check
          %p475 = pneg %p133
        $region111: #{_lambda_.6} parent=108 // pred_check_branch
          %477 = sbr.rel (%p475) target = $region113
        $region112: #{_lambda_.6} parent=108 // pred_region
          %s478 = sand.u32 %s118, 1
          %s479 = sand.u32 %s118, 1
          %s480 = smul.addr %s479, 64
          %s481 = scalar_lea.vmem [#allocation4], %s480
        $region113: #{_lambda_.6} parent=108 // pred_fallthru
          _
      $region109: #{_lambda_.6} parent=5 // pred_fallthru
        _
    $region6: #{_lambda_.6} parent=1 // loop_footer
      %s14 = sadd.s32 1, %s10
    $region7: #{_lambda_.6} parent=1 // loop_footer_branch
      %9 = sbr.rel target = $region3
    $region8: #{_lambda_.6} parent=1 // loop_exit
      _

// kernel: _lambda_.7
$region0: #{_lambda_.7}
  #allocation0 [shape = 'u32[]', space=smem, size = 0x4, offset = 0x4, fixed_abs, tag = 'smem constant byte address 0x4 - core index']
  #allocation1 [shape = 'u32[144,128]{1,0:T(1,128)}', space=vmem, size = 0x12000, scoped, tag = 'internal scratch']
  %s0 = inlined_call_operand.vmem [shape: bf16[16,512], index: 0, kind: input, shape index: {}]
  %s1 = inlined_call_operand.vmem [shape: bf16[8,16], index: 1, kind: input, shape index: {}]
  %s2 = inlined_call_operand.vmem [shape: f32[8,1], index: 2, kind: input, shape index: {}]
  %s3 = inlined_call_operand.vmem [shape: bf16[2,8], index: 3, kind: input, shape index: {}]
  %s4 = inlined_call_operand.vmem [shape: f32[2,1], index: 4, kind: input, shape index: {}]
  %s5 = inlined_call_operand.vmem [shape: f32[2,512], index: 5, kind: input, shape index: {}]
  %s6 = inlined_call_operand.vmem [shape: f32[2,512], index: 6, kind: output, shape index: {}]
  %s7 = sld [smem:[#allocation0]]
  $region95: #{_lambda_.7} parent=0
    _
  %s9 = ssub.s32 1, %s7
  %s10 = scalar_select 0, %s9, %s7
  $region1: #{_lambda_.7} parent=0
    #allocation2 [shape = 'u8[16384]{0}', space=vmem, size = 0x4000, scoped, tag = 'input window, operand 0']
    loop: start=0, step=1, limit=4
    $region2: #{_lambda_.7} parent=1 // loop_pre_header
      _
    $region3: #{_lambda_.7} parent=1 // loop_header
      %s12 = sphi 0, %s16
      %p13 = scmp.ge.s32.totalorder %s12, 4
      %s22 = sphi 0, %s24
      %s25 = sphi 0, %s22
      %s26 = sphi 0, %s25
      %s42 = sphi 0, %s26
      %s46 = sphi 0, %s46
      %s48 = sphi 0, %s46
      %s49 = sphi 0, %s48
      %s63 = sphi 0, %s49
      %s67 = sphi 0, %s67
      %s69 = sphi 0, %s67
      %s70 = sphi 0, %s69
      %s84 = sphi 0, %s70
      %s88 = sphi 0, %s88
      %s90 = sphi 0, %s88
      %s91 = sphi 0, %s90
      %s105 = sphi 0, %s91
      %s109 = sphi 0, %s109
      %s111 = sphi 0, %s109
      %s112 = sphi 0, %s111
      %s126 = sphi 0, %s112
      %s132 = sphi 0, %s134
      %s135 = sphi 0, %s132
      %s136 = sphi 0, %s135
      %s152 = sphi 0, %s136
      %s158 = sphi 0, %s160
      %s161 = sphi 0, %s158
      %s162 = sphi 0, %s161
      %s178 = sphi 0, %s162
    $region4: #{_lambda_.7} parent=1 // loop_header_branch
      %15 = sbr.rel (%p13) target = $region8
    $region5: #{_lambda_.7} parent=1 // loop_body
      %s17 = ssub.s32 %s12, 1
      %s18 = ssub.s32 %s12, 2
      %s19 = sadd.s32 %s12, 1
      %s20 = ssub.s32 %s12, %s19
      %p21 = scmp.eq.s32.totalorder %s20, 0
      %s23 = sadd.s32 %s22, 1
      %s24 = scalar_select %p21, %s22, %s23
      %p27 = pneg %p21
      %p28 = scmp.eq.s32.totalorder %s12, 1
      %p29 = por %p27, %p28
      %p30 = scmp.ne.s32.totalorder %s22, %s25
      %p31 = scmp.eq.s32.totalorder %s12, 0
      %p32 = por %p30, %p31
      %p33 = scmp.ne.s32.totalorder %s22, %s25
      %p34 = scmp.eq.s32.totalorder %s17, 1
      %p35 = por %p33, %p34
      %p36 = scmp.ne.s32.totalorder %s25, %s26
      %p37 = scmp.eq.s32.totalorder %s17, 0
      %p38 = por %p36, %p37
      %p39 = scmp.ne.s32.totalorder %s25, %s26
      %p40 = scmp.eq.s32.totalorder %s18, 1
      %p41 = por %p39, %p40
      %p43 = scmp.ne.s32.totalorder %s26, %s42
      %p44 = scmp.eq.s32.totalorder %s18, 0
      %p45 = por %p43, %p44
      %s47 = sadd.s32 %s46, 1
      %p50 = scmp.eq.s32.totalorder %s12, 1
      %p51 = scmp.ne.s32.totalorder %s46, %s48
      %p52 = scmp.eq.s32.totalorder %s12, 0
      %p53 = por %p51, %p52
      %p54 = scmp.ne.s32.totalorder %s46, %s48
      %p55 = scmp.eq.s32.totalorder %s17, 1
      %p56 = por %p54, %p55
      %p57 = scmp.ne.s32.totalorder %s48, %s49
      %p58 = scmp.eq.s32.totalorder %s17, 0
      %p59 = por %p57, %p58
      %p60 = scmp.ne.s32.totalorder %s48, %s49
      %p61 = scmp.eq.s32.totalorder %s18, 1
      %p62 = por %p60, %p61
      %p64 = scmp.ne.s32.totalorder %s49, %s63
      %p65 = scmp.eq.s32.totalorder %s18, 0
      %p66 = por %p64, %p65
      %s68 = sadd.s32 %s67, 1
      %p71 = scmp.eq.s32.totalorder %s12, 1
      %p72 = scmp.ne.s32.totalorder %s67, %s69
      %p73 = scmp.eq.s32.totalorder %s12, 0
      %p74 = por %p72, %p73
      %p75 = scmp.ne.s32.totalorder %s67, %s69
      %p76 = scmp.eq.s32.totalorder %s17, 1
      %p77 = por %p75, %p76
      %p78 = scmp.ne.s32.totalorder %s69, %s70
      %p79 = scmp.eq.s32.totalorder %s17, 0
      %p80 = por %p78, %p79
      %p81 = scmp.ne.s32.totalorder %s69, %s70
      %p82 = scmp.eq.s32.totalorder %s18, 1
      %p83 = por %p81, %p82
      %p85 = scmp.ne.s32.totalorder %s70, %s84
      %p86 = scmp.eq.s32.totalorder %s18, 0
      %p87 = por %p85, %p86
      %s89 = sadd.s32 %s88, 1
      %p92 = scmp.eq.s32.totalorder %s12, 1
      %p93 = scmp.ne.s32.totalorder %s88, %s90
      %p94 = scmp.eq.s32.totalorder %s12, 0
      %p95 = por %p93, %p94
      %p96 = scmp.ne.s32.totalorder %s88, %s90
      %p97 = scmp.eq.s32.totalorder %s17, 1
      %p98 = por %p96, %p97
      %p99 = scmp.ne.s32.totalorder %s90, %s91
      %p100 = scmp.eq.s32.totalorder %s17, 0
      %p101 = por %p99, %p100
      %p102 = scmp.ne.s32.totalorder %s90, %s91
      %p103 = scmp.eq.s32.totalorder %s18, 1
      %p104 = por %p102, %p103
      %p106 = scmp.ne.s32.totalorder %s91, %s105
      %p107 = scmp.eq.s32.totalorder %s18, 0
      %p108 = por %p106, %p107
      %s110 = sadd.s32 %s109, 1
      %p113 = scmp.eq.s32.totalorder %s12, 1
      %p114 = scmp.ne.s32.totalorder %s109, %s111
      %p115 = scmp.eq.s32.totalorder %s12, 0
      %p116 = por %p114, %p115
      %p117 = scmp.ne.s32.totalorder %s109, %s111
      %p118 = scmp.eq.s32.totalorder %s17, 1
      %p119 = por %p117, %p118
      %p120 = scmp.ne.s32.totalorder %s111, %s112
      %p121 = scmp.eq.s32.totalorder %s17, 0
      %p122 = por %p120, %p121
      %p123 = scmp.ne.s32.totalorder %s111, %s112
      %p124 = scmp.eq.s32.totalorder %s18, 1
      %p125 = por %p123, %p124
      %p127 = scmp.ne.s32.totalorder %s112, %s126
      %p128 = scmp.eq.s32.totalorder %s18, 0
      %p129 = por %p127, %p128
      %s130 = ssub.s32 %s12, %s19
      %p131 = scmp.eq.s32.totalorder %s130, 0
      %s133 = sadd.s32 %s132, 1
      %s134 = scalar_select %p131, %s132, %s133
      %p137 = pneg %p131
      %p138 = scmp.eq.s32.totalorder %s12, 1
      %p139 = por %p137, %p138
      %p140 = scmp.ne.s32.totalorder %s132, %s135
      %p141 = scmp.eq.s32.totalorder %s12, 0
      %p142 = por %p140, %p141
      %p143 = scmp.ne.s32.totalorder %s132, %s135
      %p144 = scmp.eq.s32.totalorder %s17, 1
      %p145 = por %p143, %p144
      %p146 = scmp.ne.s32.totalorder %s135, %s136
      %p147 = scmp.eq.s32.totalorder %s17, 0
      %p148 = por %p146, %p147
      %p149 = scmp.ne.s32.totalorder %s135, %s136
      %p150 = scmp.eq.s32.totalorder %s18, 1
      %p151 = por %p149, %p150
      %p153 = scmp.ne.s32.totalorder %s136, %s152
      %p154 = scmp.eq.s32.totalorder %s18, 0
      %p155 = por %p153, %p154
      %s156 = ssub.s32 %s12, %s19
      %p157 = scmp.eq.s32.totalorder %s156, 0
      %s159 = sadd.s32 %s158, 1
      %s160 = scalar_select %p157, %s158, %s159
      %p163 = pneg %p157
      %p164 = scmp.eq.s32.totalorder %s12, 1
      %p165 = por %p163, %p164
      %p166 = scmp.ne.s32.totalorder %s158, %s161
      %p167 = scmp.eq.s32.totalorder %s12, 0
      %p168 = por %p166, %p167
      %p169 = scmp.ne.s32.totalorder %s158, %s161
      %p170 = scmp.eq.s32.totalorder %s17, 1
      %p171 = por %p169, %p170
      %p172 = scmp.ne.s32.totalorder %s161, %s162
      %p173 = scmp.eq.s32.totalorder %s17, 0
      %p174 = por %p172, %p173
      %p175 = scmp.ne.s32.totalorder %s161, %s162
      %p176 = scmp.eq.s32.totalorder %s18, 1
      %p177 = por %p175, %p176
      %p179 = scmp.ne.s32.totalorder %s162, %s178
      %p180 = scmp.eq.s32.totalorder %s18, 0
      %p181 = por %p179, %p180
      %p182 = scmp.le.s32.totalorder 1, %s12
      %p183 = scmp.lt.s32.totalorder %s12, 3
      %p184 = pnand %p182, %p183
      %p185 = pneg %p184
      // Predicated region
      $region9: #{_lambda_.7} parent=5 // pred_check
        _
      $region10: #{_lambda_.7} parent=5 // pred_check_branch
        %187 = sbr.rel (%p184) target = $region12
      $region11: #{_lambda_.7} parent=5 // pred_region
        %s188 = ssub.s32 %s12, 1
        // Predicated region
        $region13: #{_lambda_.7} parent=11 // pred_check
          %p189 = pneg %p59
        $region14: #{_lambda_.7} parent=11 // pred_check_branch
          %191 = sbr.rel (%p189) target = $region16
        $region15: #{_lambda_.7} parent=11 // pred_region
          _
        $region16: #{_lambda_.7} parent=11 // pred_fallthru
          _
        // Predicated region
        $region17: #{_lambda_.7} parent=11 // pred_check
          %p192 = pneg %p80
        $region18: #{_lambda_.7} parent=11 // pred_check_branch
          %194 = sbr.rel (%p192) target = $region20
        $region19: #{_lambda_.7} parent=11 // pred_region
          _
        $region20: #{_lambda_.7} parent=11 // pred_fallthru
          _
        // Predicated region
        $region21: #{_lambda_.7} parent=11 // pred_check
          %p195 = pneg %p101
        $region22: #{_lambda_.7} parent=11 // pred_check_branch
          %197 = sbr.rel (%p195) target = $region24
        $region23: #{_lambda_.7} parent=11 // pred_region
          _
        $region24: #{_lambda_.7} parent=11 // pred_fallthru
          _
        // Predicated region
        $region25: #{_lambda_.7} parent=11 // pred_check
          %p198 = pneg %p122
        $region26: #{_lambda_.7} parent=11 // pred_check_branch
          %200 = sbr.rel (%p198) target = $region28
        $region27: #{_lambda_.7} parent=11 // pred_region
          _
        $region28: #{_lambda_.7} parent=11 // pred_fallthru
          _
      $region12: #{_lambda_.7} parent=5 // pred_fallthru
        _
      %p201 = scmp.lt.s32.totalorder %s12, 2
      // Predicated region
      $region29: #{_lambda_.7} parent=5 // pred_check
        %p202 = pneg %p201
      $region30: #{_lambda_.7} parent=5 // pred_check_branch
        %204 = sbr.rel (%p202) target = $region32
      $region31: #{_lambda_.7} parent=5 // pred_region
        // Predicated region
        $region33: #{_lambda_.7} parent=31 // pred_check
          %p205 = pneg %p32
        $region34: #{_lambda_.7} parent=31 // pred_check_branch
          %207 = sbr.rel (%p205) target = $region36
        $region35: #{_lambda_.7} parent=31 // pred_region
          %s208 = sand.u32 %s22, 1
          %s209 = sand.u32 %s22, 1
          %s210 = smul.addr %s209, 16
          %s211 = scalar_lea.vmem [#allocation2], %s210
          %s212 = smul.u32 2, %s12
          %s213 = smul.addr %s212, 4
          %s214 = scalar_lea.vmem %s0, %s213
          // Predicated region
          $region37: #{_lambda_.7} parent=35 // pred_check
            _
          $region38: #{_lambda_.7} parent=35 // pred_check_branch
            %216 = sbr.rel (0) target = $region40
          $region39: #{_lambda_.7} parent=35 // pred_region
            // Predicated region
            $region41: #{_lambda_.7} parent=39 // pred_check
              _
            $region42: #{_lambda_.7} parent=39 // pred_check_branch
              %218 = sbr.rel (0) target = $region44
            $region43: #{_lambda_.7} parent=39 // pred_region
              // Predicated region
              $region56: #{_lambda_.7} parent=43 // pred_check
                _
              $region57: #{_lambda_.7} parent=43 // pred_check_branch
                %235 = sbr.rel (0) target = $region59
              $region58: #{_lambda_.7} parent=43 // pred_region
                loop: start=0, step=1, limit=1
                $region60: #{_lambda_.7} parent=58 // loop_pre_header
                  _
                $region61: #{_lambda_.7} parent=58 // loop_header
                  %s237 = sphi 0, %s241
                  %p238 = scmp.ge.s32.totalorder %s237, 1
                  %s242 = sphi %s214, %s214
                  %s243 = sphi %s211, %s211
                $region62: #{_lambda_.7} parent=58 // loop_header_branch
                  %240 = sbr.rel (%p238) target = $region66
                $region63: #{_lambda_.7} parent=58 // loop_body
                  %v244 = vld [vmem:[%s242] sm:$0xff]
                  %245 = vst [vmem:[%s243] sm:$0xff] %v244
                  %v246 = vld [vmem:[%s242 + $0x10] sm:$0xff]
                  %247 = vst [vmem:[%s243 + $0x8] sm:$0xff] %v246
                $region64: #{_lambda_.7} parent=58 // loop_footer
                  %s241 = sadd.s32 1, %s237
                $region65: #{_lambda_.7} parent=58 // loop_footer_branch
                  %236 = sbr.rel target = $region61
                $region66: #{_lambda_.7} parent=58 // loop_exit
                  _
              $region59: #{_lambda_.7} parent=43 // pred_fallthru
                _
              // Predicated region
              $region67: #{_lambda_.7} parent=43 // pred_check
                _
              $region68: #{_lambda_.7} parent=43 // pred_check_branch
                %249 = sbr.rel target = $region70
              $region69: #{_lambda_.7} parent=43 // pred_region
                _
              $region70: #{_lambda_.7} parent=43 // pred_fallthru
                _
            $region44: #{_lambda_.7} parent=39 // pred_fallthru
              _
            // Predicated region
            $region45: #{_lambda_.7} parent=39 // pred_check
              _
            $region46: #{_lambda_.7} parent=39 // pred_check_branch
              %220 = sbr.rel target = $region48
            $region47: #{_lambda_.7} parent=39 // pred_region
              loop: start=0, step=1, limit=1
              $region49: #{_lambda_.7} parent=47 // loop_pre_header
                _
              $region50: #{_lambda_.7} parent=47 // loop_header
                %s223 = sphi 0, %s227
                %p224 = scmp.ge.s32.totalorder %s223, 1
                %s228 = sphi %s214, %s214
                %s229 = sphi %s211, %s211
              $region51: #{_lambda_.7} parent=47 // loop_header_branch
                %226 = sbr.rel (%p224) target = $region55
              $region52: #{_lambda_.7} parent=47 // loop_body
                %v230 = vld [vmem:[%s228] sm:$0xff]
                %231 = vst [vmem:[%s229] sm:$0xff] %v230
                %v232 = vld [vmem:[%s228 + $0x10] sm:$0xff]
                %233 = vst [vmem:[%s229 + $0x8] sm:$0xff] %v232
              $region53: #{_lambda_.7} parent=47 // loop_footer
                %s227 = sadd.s32 1, %s223
              $region54: #{_lambda_.7} parent=47 // loop_footer_branch
                %222 = sbr.rel target = $region50
              $region55: #{_lambda_.7} parent=47 // loop_exit
                _
            $region48: #{_lambda_.7} parent=39 // pred_fallthru
              _
          $region40: #{_lambda_.7} parent=35 // pred_fallthru
            _
          %250 = vnop
        $region36: #{_lambda_.7} parent=31 // pred_fallthru
          _
        // Predicated region
        $region71: #{_lambda_.7} parent=31 // pred_check
          %p251 = pneg %p142
        $region72: #{_lambda_.7} parent=31 // pred_check_branch
          %253 = sbr.rel (%p251) target = $region74
        $region73: #{_lambda_.7} parent=31 // pred_region
          %s254 = smul.u32 2, %s12
          %p255 = scmp.lt.s32.totalorder %s254, 3
          %s256 = scalar_select %p255, %s254, 3
          %s257 = smul.addr %s256, 2
          %s258 = scalar_lea.vmem %s5, %s257
          %s259 = smul.u32 2, %s12
        $region74: #{_lambda_.7} parent=31 // pred_fallthru
          _
      $region32: #{_lambda_.7} parent=5 // pred_fallthru
        _
      %p260 = scmp.le.s32.totalorder 1, %s12
      %p261 = scmp.lt.s32.totalorder %s12, 3
      %p262 = pnand %p260, %p261
      %p263 = pneg %p262
      // Predicated region
      $region75: #{_lambda_.7} parent=5 // pred_check
        _
      $region76: #{_lambda_.7} parent=5 // pred_check_branch
        %265 = sbr.rel (%p262) target = $region78
      $region77: #{_lambda_.7} parent=5 // pred_region
        %s266 = ssub.s32 %s12, 1
        %s267 = sand.u32 %s25, 1
        %s268 = sand.u32 %s25, 1
        %s269 = smul.addr %s268, 16
        %s270 = scalar_lea.vmem [#allocation2], %s269
        // Predicated region
        $region79: #{_lambda_.7} parent=77 // pred_check
          %p271 = pneg %p38
        $region80: #{_lambda_.7} parent=77 // pred_check_branch
          %273 = sbr.rel (%p271) target = $region82
        $region81: #{_lambda_.7} parent=77 // pred_region
          _
        $region82: #{_lambda_.7} parent=77 // pred_fallthru
          _
        %s274 = sand.u32 %s25, 1
        %s275 = sand.u32 %s25, 1
        %s276 = smul.addr %s275, 16
        %s277 = scalar_lea.vmem [#allocation2], %s276
        %p278 = pneg %p38
        %p279 = pneg %p35
        %p280 = pneg %p59
        %p281 = pneg %p56
        %p282 = pneg %p80
        %p283 = pneg %p77
        %p284 = pneg %p101
        %p285 = pneg %p98
        %p286 = pneg %p122
        %p287 = pneg %p119
        %s288 = smul.u32 2, %s17
        %p289 = scmp.lt.s32.totalorder %s288, 3
        %s290 = scalar_select %p289, %s288, 3
        %s291 = smul.addr %s290, 2
        %s292 = scalar_lea.vmem %s5, %s291
        %p293 = pneg %p148
        %p294 = pneg %p145
        %p295 = pneg %p174
        %p296 = pneg %p171
        %s297 = smul.u32 2, %s17
        %p298 = scmp.lt.s32.totalorder %s297, 3
        %s299 = scalar_select %p298, %s297, 3
        %s300 = smul.addr %s299, 2
        %s301 = scalar_lea.vmem %s6, %s300
        %s302 = smul.u32 2, %s17
        %s303 = smul.u32 2, %s17
        %p304 = scmp.lt.s32.totalorder %s303, 3
        %s305 = scalar_select %p304, %s303, 3
        %s306 = smul.addr %s305, 2
        %s307 = scalar_lea.vmem %s5, %s306
        %s308 = smul.u32 2, %s17
        %s309 = smul.u32 2, %s17
        %p310 = scmp.lt.s32.totalorder %s309, 3
        %s311 = scalar_select %p310, %s309, 3
        %s312 = smul.addr %s311, 2
        %s313 = scalar_lea.vmem %s6, %s312
        %s314 = smul.u32 2, %s17
        %v316 = vld [vmem:[%s1] sm:$0xf]
        %v317 = vld [vmem:[%s270] sm:$0xff]
        %v318 = vld [vmem:[%s270 + $0x8] sm:$0xff]
        %v319 = vld [vmem:[%s2] sm:$0xff]
        %321 = vset.pattern.permute.xlu0 0
        %322 = vperm.xlu0 %321, %v319
        %v323 = vpop.permute.xlu0 %322
        %v327 = vunpack.c.l.b16 %v317
        %v328 = vunpack.c.h.b16 %v317
        %v329 = vunpack.c.l.b16 %v318
        %v330 = vunpack.c.h.b16 %v318
        %v331 = vpack.c.b16 %v329, %v327
        %v332 = vpack.c.b16 %v330, %v328
        %vm335 = vcmask 130048
        %v337 = vsel %vm335, %v316, 0
        %339 = vmatprep.subr.bf16.mxu0 %v332
        %340 = vmatpush1.bf16.msra.mxu0 %v331
        %341 = vmatprep.subr.bf16.mxu0 0
        %342 = vmatpush1.bf16.msra.mxu0 0
        %343 = vmatprep.subr.bf16.mxu0 0
        %344 = vmatpush1.bf16.msra.mxu0 0
        %345 = vmatprep.subr.bf16.mxu0 0
        %346 = vmatpush1.bf16.msra.mxu0 0
        %347 = vmatprep.subr.bf16.mxu0 0
        %348 = vmatpush1.bf16.msra.mxu0 0
        %349 = vmatprep.subr.bf16.mxu0 0
        %350 = vmatpush1.bf16.msra.mxu0 0
        %351 = vmatprep.subr.bf16.mxu0 0
        %352 = vmatpush1.bf16.msra.mxu0 0
        %353 = vmatprep.subr.bf16.mxu0 0
        %354 = vmatpush1.bf16.msra.mxu0 0
        %355 = vmatprep.subr.bf16.mxu0 0
        %356 = vmatpush1.bf16.msra.mxu0 0
        %357 = vmatprep.subr.bf16.mxu0 0
        %358 = vmatpush1.bf16.msra.mxu0 0
        %359 = vmatprep.subr.bf16.mxu0 0
        %360 = vmatpush1.bf16.msra.mxu0 0
        %361 = vmatprep.subr.bf16.mxu0 0
        %362 = vmatpush1.bf16.msra.mxu0 0
        %363 = vmatprep.subr.bf16.mxu0 0
        %364 = vmatpush1.bf16.msra.mxu0 0
        %365 = vmatprep.subr.bf16.mxu0 0
        %366 = vmatpush1.bf16.msra.mxu0 0
        %367 = vmatprep.subr.bf16.mxu0 0
        %368 = vmatpush1.bf16.msra.mxu0 0
        %369 = vmatprep.subr.bf16.mxu0 0
        %370 = vmatpush1.bf16.msra.mxu0 0
        %371 = vmatprep.mubr.bf16.mxu0 0
        %372 = vmatmul.mubr.bf16.gmra.mrb[0].mxu0 %v337
        %v373 = vpop.f32.mrb[0].mxu0
        %v374 = vadd.f32 %v323, %v373
        %v375 = vpop.f32.mrb[0].mxu0
        %v376 = vadd.f32 %v323, %v375
        %v377 = vpop.f32.mrb[0].mxu0
        %v378 = vpop.f32.mrb[0].mxu0
        %379 = vdwg.mxu0
        %v380 = vmax.f32 %v374, 0.0
        %v381 = vmax.f32 %v376, 0.0
        %v382 = vld [vmem:[%s3] sm:$0x1]
        %v383 = vpack.c.bf16 %v380, %v380
        %v384 = vpack.c.bf16 %v381, %v381
        %v385 = vld [vmem:[%s4] sm:$0x3]
        %387 = vset.pattern.permute.xlu0 0
        %388 = vperm.xlu0 %387, %v385
        %v389 = vpop.permute.xlu0 %388
        %vm391 = vcmask 64512
        %v393 = vsel %vm391, %v382, 0
        %vm395 = vcmask 1043456
        %v397 = vsel %vm395, %v383, 0
        %v400 = vsel %vm395, %v384, 0
        %402 = vmatprep.subr.bf16.mxu0 %v400
        %403 = vmatpush1.bf16.msra.mxu0 %v397
        %404 = vmatprep.subr.bf16.mxu0 0
        %405 = vmatpush1.bf16.msra.mxu0 0
        %406 = vmatprep.subr.bf16.mxu0 0
        %407 = vmatpush1.bf16.msra.mxu0 0
        %408 = vmatprep.subr.bf16.mxu0 0
        %409 = vmatpush1.bf16.msra.mxu0 0
        %410 = vmatprep.subr.bf16.mxu0 0
        %411 = vmatpush1.bf16.msra.mxu0 0
        %412 = vmatprep.subr.bf16.mxu0 0
        %413 = vmatpush1.bf16.msra.mxu0 0
        %414 = vmatprep.subr.bf16.mxu0 0
        %415 = vmatpush1.bf16.msra.mxu0 0
        %416 = vmatprep.subr.bf16.mxu0 0
        %417 = vmatpush1.bf16.msra.mxu0 0
        %418 = vmatprep.subr.bf16.mxu0 0
        %419 = vmatpush1.bf16.msra.mxu0 0
        %420 = vmatprep.subr.bf16.mxu0 0
        %421 = vmatpush1.bf16.msra.mxu0 0
        %422 = vmatprep.subr.bf16.mxu0 0
        %423 = vmatpush1.bf16.msra.mxu0 0
        %424 = vmatprep.subr.bf16.mxu0 0
        %425 = vmatpush1.bf16.msra.mxu0 0
        %426 = vmatprep.subr.bf16.mxu0 0
        %427 = vmatpush1.bf16.msra.mxu0 0
        %428 = vmatprep.subr.bf16.mxu0 0
        %429 = vmatpush1.bf16.msra.mxu0 0
        %430 = vmatprep.subr.bf16.mxu0 0
        %431 = vmatpush1.bf16.msra.mxu0 0
        %432 = vmatprep.subr.bf16.mxu0 0
        %433 = vmatpush1.bf16.msra.mxu0 0
        %434 = vmatprep.mubr.bf16.mxu0 0
        %435 = vmatmul.mubr.bf16.gmra.mrb[0].mxu0 %v393
        %v436 = vpop.f32.mrb[0].mxu0
        %v437 = vadd.f32 %v389, %v436
        %v438 = vpop.f32.mrb[0].mxu0
        %v439 = vadd.f32 %v389, %v438
        %v440 = vpop.f32.mrb[0].mxu0
        %v441 = vpop.f32.mrb[0].mxu0
        %442 = vdwg.mxu0
        %v443 = vld [vmem:[%s307] ss:$2 sm:$0x3]
        %s444 = scalar_lea.vmem %s307, 1
        %v445 = vld [vmem:[%s444] ss:$2 sm:$0x3]
        %v446 = vadd.f32 %v437, 1.0
        %v447 = vadd.f32 %v439, 1.0
        %v450 = vcombine.low %v446, %v447
        %v452 = vunpack.c.l.s4 1966171168
        %v453 = vunpack.c.0.s8 %v452
        %v454 = vlaneseq
        %v455 = vshrl.u32 %v454, 7
        %v456 = vsub.s32 %v453, %v455
        %v457 = vrot.slane %v450, %v456
        %v459 = vunpack.c.l.s4 1966171168
        %v460 = vunpack.c.0.s8 %v459
        %v461 = vlaneseq
        %v462 = vshrl.u32 %v461, 7
        %v463 = vsub.s32 %v460, %v462
        %v464 = vrot.slane %v457, %v463
        %v466 = vmul.f32 %v443, %v464
        %v469 = vcombine.low %v437, %v439
        %v471 = vunpack.c.l.s4 1966171168
        %v472 = vunpack.c.0.s8 %v471
        %v473 = vlaneseq
        %v474 = vshrl.u32 %v473, 7
        %v475 = vsub.s32 %v472, %v474
        %v476 = vrot.slane %v469, %v475
        %v477 = vcombine.high %v476, %v476
        %v479 = vunpack.c.l.s4 1966171168
        %v480 = vunpack.c.0.s8 %v479
        %v481 = vlaneseq
        %v482 = vshrl.u32 %v481, 7
        %v483 = vsub.s32 %v480, %v482
        %v484 = vrot.slane %v477, %v483
        %v486 = vmul.f32 %v445, %v484
        %v487 = vsub.f32 %v466, %v486
        %v488 = vlaneseq
        %vm489 = vcmp.ge.s32.totalorder %v488, 0
        %vm490 = vcmp.lt.s32.totalorder %v488, 256
        %vm491 = vmand %vm489, %vm490
        %492 = vst.msk [vmem:[%s313] ss:$2 sm:$0x3] %vm491, %v487
        %v493 = vmul.f32 %v443, %v484
        %v494 = vmul.f32 %v445, %v464
        %v495 = vadd.f32 %v493, %v494
        %s496 = scalar_lea.vmem %s313, 1
        %497 = vst.msk [vmem:[%s496] ss:$2 sm:$0x3] %vm491, %v495
        %s498 = smul.u32 2, %s17
        %p499 = scmp.lt.s32.totalorder %s498, 3
        %s500 = scalar_select %p499, %s498, 3
        %s501 = smul.addr %s500, 2
        %s502 = scalar_lea.vmem %s6, %s501
        // Predicated region
        $region83: #{_lambda_.7} parent=77 // pred_check
          %p503 = pneg %p171
        $region84: #{_lambda_.7} parent=77 // pred_check_branch
          %505 = sbr.rel (%p503) target = $region86
        $region85: #{_lambda_.7} parent=77 // pred_region
          %s506 = smul.u32 2, %s17
        $region86: #{_lambda_.7} parent=77 // pred_fallthru
          _
      $region78: #{_lambda_.7} parent=5 // pred_fallthru
        _
      %p507 = scmp.le.s32.totalorder 2, %s12
      // Predicated region
      $region87: #{_lambda_.7} parent=5 // pred_check
        %p508 = pneg %p507
      $region88: #{_lambda_.7} parent=5 // pred_check_branch
        %510 = sbr.rel (%p508) target = $region90
      $region89: #{_lambda_.7} parent=5 // pred_region
        %s511 = ssub.s32 %s12, 2
        // Predicated region
        $region91: #{_lambda_.7} parent=89 // pred_check
          %p512 = pneg %p177
        $region92: #{_lambda_.7} parent=89 // pred_check_branch
          %514 = sbr.rel (%p512) target = $region94
        $region93: #{_lambda_.7} parent=89 // pred_region
          %s515 = smul.u32 2, %s18
          %p516 = scmp.lt.s32.totalorder %s515, 3
          %s517 = scalar_select %p516, %s515, 3
          %s518 = smul.addr %s517, 2
          %s519 = scalar_lea.vmem %s6, %s518
        $region94: #{_lambda_.7} parent=89 // pred_fallthru
          _
      $region90: #{_lambda_.7} parent=5 // pred_fallthru
        _
    $region6: #{_lambda_.7} parent=1 // loop_footer
      %s16 = sadd.s32 1, %s12
    $region7: #{_lambda_.7} parent=1 // loop_footer_branch
      %11 = sbr.rel target = $region3
    $region8: #{_lambda_.7} parent=1 // loop_exit
      _

</llo_original>
